<compile_context>
chip_gen: v6e
topology: v6e:2x2x1
jax: 0.10.0
libtpu: 0.0.40
codegen_flags: <defaults>
</compile_context>

<pallas_src>
import functools

import jax
import jax.numpy as jnp
from jax.experimental import pallas as pl
from jax.experimental.pallas import tpu as pltpu

BN_EPS = 1e-5
LANE = 128
# Scoped-VMEM budget: fits v5e/v6e (128 MiB parts) and v7x's 64 MiB physical.
VMEM_LIMIT_BYTES = 32 * 1024 * 1024


def _round_up(x, m):
    return (x + m - 1) // m * m


def _row_tile(h, w, target_rows=512):
    """Largest divisor t of h with t*w <= target_rows (biggest tile that fits)."""
    best = 1
    for t in range(1, h + 1):
        if h % t == 0 and t * w <= max(target_rows, w):
            best = t
    return best


# ---------------------------------------------------------------------------
# Kernels
# ---------------------------------------------------------------------------
def _conv3x3_stats_kernel(x_ref, w_ref, out_ref, stats_ref, *, th, W):
    """3x3 conv on one row-slab as 3 accumulated MXU matmuls + BN partial stats.

    x_ref:     (1, (th+2)*W, Kp) bf16  flattened row-slab incl. 1-row halo;
                                       lanes hold the 3 W-taps * Cin, zero
                                       padded to Kp (multiple of 128).
    w_ref:     (3*Kp, Cp)        bf16  packed weights, K index = dh*Kp + lane.
    out_ref:   (1, th*W, Cp)     bf16  raw (pre-BN) conv output rows.
    stats_ref: (1, 2, Cp)        f32   per-tile [sum(x), sum(x*x)] per channel.
    """
    rows = th * W
    Kp = x_ref.shape[-1]
    # The 3 H-taps are contiguous, W-aligned row windows of the slab; each tap
    # is a separate K=Kp matmul accumulated in f32 (no (rows, 3*Kp) concat).
    acc = jnp.dot(x_ref[0, pl.ds(0, rows), :], w_ref[pl.ds(0, Kp), :],
                  preferred_element_type=jnp.float32)
    for dh in (1, 2):
        acc = acc + jnp.dot(x_ref[0, pl.ds(dh * W, rows), :],
                            w_ref[pl.ds(dh * Kp, Kp), :],
                            preferred_element_type=jnp.float32)
    out_ref[0] = acc.astype(out_ref.dtype)
    s1 = jnp.sum(acc, axis=0, keepdims=True)            # (1, Cp)
    s2 = jnp.sum(acc * acc, axis=0, keepdims=True)      # (1, Cp)
    stats_ref[0] = jnp.concatenate([s1, s2], axis=0)    # (2, Cp)


def _bn_scale_shift(stats_ref, gamma_ref, beta_ref, inv_count):
    """Per-channel scale/shift from global [sum, sumsq]; all math in f32."""
    mean = stats_ref[0:1, :] * inv_count
    ex2 = stats_ref[1:2, :] * inv_count
    var = jnp.maximum(ex2 - mean * mean, 0.0)   # single-pass biased variance
    inv = jax.lax.rsqrt(var + BN_EPS)
    scale = gamma_ref[...] * inv                # (1, Cp)
    shift = beta_ref[...] - mean * scale        # (1, Cp)
    return scale, shift


def _bn_relu_kernel(x_ref, stats_ref, gamma_ref, beta_ref, out_ref, *, inv_count):
    """BatchNorm (batch statistics) + ReLU over one (rows, Cp) tile."""
    scale, shift = _bn_scale_shift(stats_ref, gamma_ref, beta_ref, inv_count)
    x = x_ref[0].astype(jnp.float32)            # (rows, Cp)
    out_ref[0] = jnp.maximum(x * scale + shift, 0.0).astype(out_ref.dtype)


def _bn_relu_pool_kernel(x_ref, stats_ref, gamma_ref, beta_ref, out_ref, *,
                         inv_count, Cp, pool_type):
    """Fused BatchNorm + ReLU + 2x2 pooling.

    x_ref:   (1, tph, 2, Wh, 2*Cp) bf16 -- the 2x2 window is folded into the
             row-pair axis (dim 2) and the lane axis ([even-col | odd-col]).
    out_ref: (1, tph, Wh, Cp) f32.
    """
    scale, shift = _bn_scale_shift(stats_ref, gamma_ref, beta_ref, inv_count)
    scale2 = jnp.concatenate([scale, scale], axis=-1).reshape(1, 1, 1, 2 * Cp)
    shift2 = jnp.concatenate([shift, shift], axis=-1).reshape(1, 1, 1, 2 * Cp)
    x = x_ref[0].astype(jnp.float32)            # (tph, 2, Wh, 2*Cp)
    y = jnp.maximum(x * scale2 + shift2, 0.0)
    tl = y[:, 0, :, 0:Cp]                       # (tph, Wh, Cp)
    tr = y[:, 0, :, Cp:2 * Cp]
    bl = y[:, 1, :, 0:Cp]
    br = y[:, 1, :, Cp:2 * Cp]
    if pool_type == "avg":
        res = (tl + tr + bl + br) * 0.25
    elif pool_type == "max":
        res = jnp.maximum(jnp.maximum(tl, tr), jnp.maximum(bl, br))
    elif pool_type == "avg+max":
        res = (tl + tr + bl + br) * 0.25 + jnp.maximum(
            jnp.maximum(tl, tr), jnp.maximum(bl, br))
    else:
        raise Exception("Incorrect argument!")
    out_ref[0] = res.astype(out_ref.dtype)


# ---------------------------------------------------------------------------
# Wrappers (pallas_call + pure layout glue)
# ---------------------------------------------------------------------------
def conv3x3_with_stats(x_nhwc, w9, *, th):
    """3x3 same conv (no bias) of real-channel NHWC input, tiled over row-slabs.

    Returns (conv_raw (NB, th*W, Cp) bf16, partial_stats (NB, 2, Cp) f32),
    NB = N*H/th, Cp = round_up(Cout, 128).
    """
    N, H, W, Cin = x_nhwc.shape
    Cout = w9.shape[-1]
    Cp = _round_up(Cout, LANE)
    Kp = _round_up(3 * Cin, LANE)
    nH = H // th
    NB = N * nH
    rows_in = (th + 2) * W

    xb = x_nhwc.astype(jnp.bfloat16)
    xp = jnp.pad(xb, ((0, 0), (1, 1), (1, 1), (0, 0)))          # (N,H+2,W+2,Cin)
    # Layout glue (no compute): fold the 3 W-taps onto the zero-padded lane
    # axis (no byte growth while 3*Cin <= Kp), then cut overlapping row-slabs
    # with a 1-row halo so the grid uses plain non-overlapping block indices.
    # TODO(synk): for very large Cin (3*Cin >> 128) read the W-taps in-kernel
    # instead of folding them, to avoid the up-to-3x lane fold.
    xw = jnp.concatenate([xp[:, :, dw:dw + W, :] for dw in range(3)], axis=-1)
    xw = jnp.pad(xw, ((0, 0), (0, 0), (0, 0), (0, Kp - 3 * Cin)))
    xs = jnp.stack([xw[:, i * th:i * th + th + 2] for i in range(nH)], axis=1)
    xs = xs.reshape(NB, rows_in, Kp)

    # Pack weights: (9, Cin, Cout) -> (3, 3*Cin, Cout) -> zero-pad -> (3*Kp, Cp).
    wt = w9.reshape(3, 3 * Cin, Cout)
    wt = jnp.pad(wt, ((0, 0), (0, Kp - 3 * Cin), (0, Cp - Cout)))
    wt = wt.reshape(3 * Kp, Cp).astype(jnp.bfloat16)

    kern = functools.partial(_conv3x3_stats_kernel, th=th, W=W)
    conv_raw, stats = pl.pallas_call(
        kern,
        grid=(NB,),
        in_specs=[
            pl.BlockSpec((1, rows_in, Kp), lambda i: (i, 0, 0)),
            pl.BlockSpec((3 * Kp, Cp), lambda i: (0, 0)),   # weights stay resident
        ],
        out_specs=[
            pl.BlockSpec((1, th * W, Cp), lambda i: (i, 0, 0)),
            pl.BlockSpec((1, 2, Cp), lambda i: (i, 0, 0)),
        ],
        out_shape=[
            jax.ShapeDtypeStruct((NB, th * W, Cp), jnp.bfloat16),
            jax.ShapeDtypeStruct((NB, 2, Cp), jnp.float32),
        ],
        compiler_params=pltpu.CompilerParams(
            dimension_semantics=("parallel",),   # independent tiles (v7x: 2 TCs)
            vmem_limit_bytes=VMEM_LIMIT_BYTES),
    )(xs, wt)
    return conv_raw, stats


def bn_relu_apply(conv_raw, stats, gamma_p, beta_p, count, out_dtype=jnp.bfloat16):
    NB, R, Cp = conv_raw.shape
    kern = functools.partial(_bn_relu_kernel, inv_count=1.0 / float(count))
    return pl.pallas_call(
        kern,
        grid=(NB,),
        in_specs=[
            pl.BlockSpec((1, R, Cp), lambda i: (i, 0, 0)),
            pl.BlockSpec((2, Cp), lambda i: (0, 0)),
            pl.BlockSpec((1, Cp), lambda i: (0, 0)),
            pl.BlockSpec((1, Cp), lambda i: (0, 0)),
        ],
        out_specs=pl.BlockSpec((1, R, Cp), lambda i: (i, 0, 0)),
        out_shape=jax.ShapeDtypeStruct((NB, R, Cp), out_dtype),
        compiler_params=pltpu.CompilerParams(
            dimension_semantics=("parallel",),
            vmem_limit_bytes=VMEM_LIMIT_BYTES),
    )(conv_raw, stats, gamma_p, beta_p)


def bn_relu_pool2x2(conv_raw_nhwc, stats, gamma_p, beta_p, count, pool_type):
    """Fused BN + ReLU + 2x2 pool; input is the pre-BN conv output (N,H,W,Cp)."""
    N, H, W, Cp = conv_raw_nhwc.shape
    Hh, Wh = H // 2, W // 2
    x = conv_raw_nhwc[:, :Hh * 2, :Wh * 2, :]        # floor(), like F.*_pool2d
    xf = x.reshape(N, Hh, 2, Wh, 2 * Cp)             # pure (free) window fold
    tph = _row_tile(Hh, Wh)
    kern = functools.partial(_bn_relu_pool_kernel,
                             inv_count=1.0 / float(count), Cp=Cp,
                             pool_type=pool_type)
    return pl.pallas_call(
        kern,
        grid=(N, Hh // tph),
        in_specs=[
            pl.BlockSpec((1, tph, 2, Wh, 2 * Cp), lambda n, i: (n, i, 0, 0, 0)),
            pl.BlockSpec((2, Cp), lambda n, i: (0, 0)),
            pl.BlockSpec((1, Cp), lambda n, i: (0, 0)),
            pl.BlockSpec((1, Cp), lambda n, i: (0, 0)),
        ],
        out_specs=pl.BlockSpec((1, tph, Wh, Cp), lambda n, i: (n, i, 0, 0)),
        out_shape=jax.ShapeDtypeStruct((N, Hh, Wh, Cp), jnp.float32),
        compiler_params=pltpu.CompilerParams(
            dimension_semantics=("parallel", "parallel"),
            vmem_limit_bytes=VMEM_LIMIT_BYTES),
    )(xf, stats, gamma_p, beta_p)


# ---------------------------------------------------------------------------
# Parameters & forward
# ---------------------------------------------------------------------------
def init_conv_block_params(key, in_channels, out_channels):
    """Deterministic init matching ConvBlock.__init__/init_weight."""
    k1, k2 = jax.random.split(key)

    def xavier_conv(k, cout, cin):
        # nn.init.xavier_uniform_ on a (cout, cin, 3, 3) conv weight.
        fan_in, fan_out = cin * 9, cout * 9
        bound = (6.0 / (fan_in + fan_out)) ** 0.5
        w = jax.random.uniform(k, (cout, cin, 3, 3), jnp.float32, -bound, bound)
        # (cout, cin, kh, kw) -> (kh, kw, cin, cout) -> (9, cin, cout)
        return jnp.transpose(w, (2, 3, 1, 0)).reshape(9, cin, cout)

    return dict(
        w1=xavier_conv(k1, out_channels, in_channels),
        w2=xavier_conv(k2, out_channels, out_channels),
        gamma1=jnp.ones((1, out_channels), jnp.float32),   # init_bn: weight=1
        beta1=jnp.zeros((1, out_channels), jnp.float32),   # init_bn: bias=0
        gamma2=jnp.ones((1, out_channels), jnp.float32),
        beta2=jnp.zeros((1, out_channels), jnp.float32),
    )


def conv_block_forward(x_nchw, params, pool_size=(2, 2), pool_type="avg"):
    # TODO(synk): kernels are specialized for the module default pool_size=(2, 2).
    assert pool_size == (2, 2)
    N, _, H, W = x_nchw.shape
    Cout = params["w1"].shape[-1]
    Cp = _round_up(Cout, LANE)
    count = N * H * W                       # BN reduces over (N, H, W)
    th = _row_tile(H, W)

    def pad_c(p):                           # zero-pad affine params to Cp lanes
        return jnp.pad(p, ((0, 0), (0, Cp - Cout)))   # -> padded channels stay 0

    g1, b1 = pad_c(params["gamma1"]), pad_c(params["beta1"])
    g2, b2 = pad_c(params["gamma2"]), pad_c(params["beta2"])

    x = jnp.transpose(x_nchw, (0, 2, 3, 1))             # NCHW -> NHWC

    # Layer 1: conv (+ per-tile stats) -> combine -> BN + ReLU.
    raw1, pstats1 = conv3x3_with_stats(x, params["w1"], th=th)
    stats1 = jnp.sum(pstats1, axis=0)       # tiny (tiles, 2, Cp) -> (2, Cp) combine
    act1 = bn_relu_apply(raw1, stats1, g1, b1, count)   # (NB, th*W, Cp) bf16

    # Layer 2: conv (+ stats) -> combine -> fused BN + ReLU + 2x2 pool.
    act1_nhwc = act1.reshape(N, H // th, th, W, Cp).reshape(N, H, W, Cp)
    raw2, pstats2 = conv3x3_with_stats(act1_nhwc[..., :Cout], params["w2"], th=th)
    stats2 = jnp.sum(pstats2, axis=0)

    if H < 2:   # PyTorch: `if x.shape[2] < 2: return x` (skip pooling)
        act2 = bn_relu_apply(raw2, stats2, g2, b2, count, out_dtype=jnp.float32)
        out = act2.reshape(N, H // th, th, W, Cp).reshape(N, H, W, Cp)
        return jnp.transpose(out[..., :Cout], (0, 3, 1, 2))

    raw2_nhwc = raw2.reshape(N, H // th, th, W, Cp).reshape(N, H, W, Cp)
    out = bn_relu_pool2x2(raw2_nhwc, stats2, g2, b2, count, pool_type)
    return jnp.transpose(out[..., :Cout], (0, 3, 1, 2))        # NCHW, f32


# ---------------------------------------------------------------------------
# Pure-JAX reference (training-mode BatchNorm, biased variance)
# ---------------------------------------------------------------------------
def conv_block_reference(x_nchw, params, pool_type="avg"):
    def conv(x, w9):
        cin, cout = w9.shape[1], w9.shape[2]
        w = w9.reshape(3, 3, cin, cout)                 # (kh, kw, cin, cout)
        return jax.lax.conv_general_dilated(
            x, w, window_strides=(1, 1), padding=((1, 1), (1, 1)),
            dimension_numbers=("NCHW", "HWIO", "NCHW"))

    def bn_relu(x, gamma, beta):
        mean = jnp.mean(x, axis=(0, 2, 3), keepdims=True)
        var = jnp.mean((x - mean) ** 2, axis=(0, 2, 3), keepdims=True)
        g = gamma.reshape(1, -1, 1, 1)
        b = beta.reshape(1, -1, 1, 1)
        return jnp.maximum((x - mean) * jax.lax.rsqrt(var + BN_EPS) * g + b, 0.0)

    x = bn_relu(conv(x_nchw, params["w1"]), params["gamma1"], params["beta1"])
    x = bn_relu(conv(x, params["w2"]), params["gamma2"], params["beta2"])
    if x.shape[2] < 2:
        return x
    N, C, H, W = x.shape
    Hh, Wh = H // 2, W // 2
    xw = x[:, :, :Hh * 2, :Wh * 2].reshape(N, C, Hh, 2, Wh, 2)
    avg = xw.mean(axis=(3, 5))
    mx = xw.max(axis=(3, 5))
    if pool_type == "avg":
        return avg
    if pool_type == "max":
        return mx
    if pool_type == "avg+max":
        return avg + mx
    raise Exception("Incorrect argument!")


if __name__ == "__main__":
    key = jax.random.PRNGKey(0)
    kx, kp = jax.random.split(key)

    N, C_IN, C_OUT, H, W = 2, 4, 8, 16, 16
    x = jax.random.normal(kx, (N, C_IN, H, W), jnp.float32)
    params = init_conv_block_params(kp, C_IN, C_OUT)

    fwd = jax.jit(conv_block_forward, static_argnames=("pool_size", "pool_type"))

    ok = True
    for pool_type in ("avg", "avg+max"):
        out = fwd(x, params, pool_type=pool_type)
        jax.block_until_ready(out)
        assert out.shape == (N, C_OUT, H // 2, W // 2)
        assert out.dtype == jnp.float32
        assert bool(jnp.all(jnp.isfinite(out)))
        ref = conv_block_reference(x, params, pool_type=pool_type)
        # bf16 activations in the Pallas path -> loose-but-safe tolerance.
        max_err = float(jnp.max(jnp.abs(out - ref)))
        ok = ok and (max_err < 0.1)

    if ok:
        print("KERNEL_OK")
</pallas_src>

<mosaic_0001>
module attributes {stable_mosaic.version = 11 : i64} {
  func.func @_conv3x3_stats_kernel(%arg0: i32, %arg1: memref<1x288x128xbf16, #tpu.memory_space<vmem>>, %arg2: memref<384x128xbf16, #tpu.memory_space<vmem>>, %arg3: memref<1x256x128xbf16, #tpu.memory_space<vmem>>, %arg4: memref<1x2x128xf32, #tpu.memory_space<vmem>>) attributes {dimension_semantics = [#tpu.dimension_semantics<parallel>], iteration_bounds = array<i64: 2>, scalar_prefetch = 0 : i64, scratch_operands = 0 : i64, tpu.core_type = #tpu.core_type<tc>, window_params = [{transform_indices = @transform_0, window_bounds = array<i64: 1, 288, 128>}, {pipeline_mode = #tpu.pipeline_mode<synchronous>, transform_indices = @transform_1, window_bounds = array<i64: 384, 128>}, {transform_indices = @transform_2, window_bounds = array<i64: 1, 256, 128>}, {transform_indices = @transform_3, window_bounds = array<i64: 1, 2, 128>}]} {
    %c0 = arith.constant 0 : index
    %c0_0 = arith.constant 0 : index
    %c0_1 = arith.constant 0 : index
    %0 = vector.load %arg1[%c0, %c0_0, %c0_1] : memref<1x288x128xbf16, #tpu.memory_space<vmem>>, vector<1x256x128xbf16>
    %1 = vector.shape_cast %0 : vector<1x256x128xbf16> to vector<256x128xbf16>
    %c0_2 = arith.constant 0 : index
    %c0_3 = arith.constant 0 : index
    %2 = vector.load %arg2[%c0_2, %c0_3] : memref<384x128xbf16, #tpu.memory_space<vmem>>, vector<128x128xbf16>
    %cst = arith.constant dense<0.000000e+00> : vector<256x128xf32>
    %3 = tpu.matmul %1, %2, %cst {dimension_numbers = #tpu.dot_dimension_numbers<[1], [0], [0], [1], [0, 0, 1, 1], [], []>} : vector<256x128xbf16>, vector<128x128xbf16>, vector<256x128xf32> -> vector<256x128xf32>
    %c0_4 = arith.constant 0 : index
    %c16 = arith.constant 16 : index
    %c0_5 = arith.constant 0 : index
    %4 = vector.load %arg1[%c0_4, %c16, %c0_5] : memref<1x288x128xbf16, #tpu.memory_space<vmem>>, vector<1x256x128xbf16>
    %5 = vector.shape_cast %4 : vector<1x256x128xbf16> to vector<256x128xbf16>
    %c128 = arith.constant 128 : index
    %c0_6 = arith.constant 0 : index
    %6 = vector.load %arg2[%c128, %c0_6] : memref<384x128xbf16, #tpu.memory_space<vmem>>, vector<128x128xbf16>
    %cst_7 = arith.constant dense<0.000000e+00> : vector<256x128xf32>
    %7 = tpu.matmul %5, %6, %cst_7 {dimension_numbers = #tpu.dot_dimension_numbers<[1], [0], [0], [1], [0, 0, 1, 1], [], []>} : vector<256x128xbf16>, vector<128x128xbf16>, vector<256x128xf32> -> vector<256x128xf32>
    %8 = arith.addf %3, %7 : vector<256x128xf32>
    %c0_8 = arith.constant 0 : index
    %c32 = arith.constant 32 : index
    %c0_9 = arith.constant 0 : index
    %9 = vector.load %arg1[%c0_8, %c32, %c0_9] : memref<1x288x128xbf16, #tpu.memory_space<vmem>>, vector<1x256x128xbf16>
    %10 = vector.shape_cast %9 : vector<1x256x128xbf16> to vector<256x128xbf16>
    %c256 = arith.constant 256 : index
    %c0_10 = arith.constant 0 : index
    %11 = vector.load %arg2[%c256, %c0_10] : memref<384x128xbf16, #tpu.memory_space<vmem>>, vector<128x128xbf16>
    %cst_11 = arith.constant dense<0.000000e+00> : vector<256x128xf32>
    %12 = tpu.matmul %10, %11, %cst_11 {dimension_numbers = #tpu.dot_dimension_numbers<[1], [0], [0], [1], [0, 0, 1, 1], [], []>} : vector<256x128xbf16>, vector<128x128xbf16>, vector<256x128xf32> -> vector<256x128xf32>
    %13 = arith.addf %8, %12 : vector<256x128xf32>
    %14 = arith.truncf %13 : vector<256x128xf32> to vector<256x128xbf16>
    %c0_12 = arith.constant 0 : index
    %c0_13 = arith.constant 0 : index
    %c0_14 = arith.constant 0 : index
    %15 = vector.load %arg3[%c0_12, %c0_13, %c0_14] : memref<1x256x128xbf16, #tpu.memory_space<vmem>>, vector<1x256x128xbf16>
    %16 = vector.shape_cast %15 : vector<1x256x128xbf16> to vector<256x128xbf16>
    %17 = vector.shape_cast %14 : vector<256x128xbf16> to vector<1x256x128xbf16>
    tpu.vector_store %arg3[%c0_12, %c0_13, %c0_14], %17 {strides = array<i32>} : memref<1x256x128xbf16, #tpu.memory_space<vmem>>, vector<1x256x128xbf16>,
    %cst_15 = arith.constant dense<0.000000e+00> : vector<128xf32>
    %18 = vector.multi_reduction <add>, %13, %cst_15 [0] : vector<256x128xf32> to vector<128xf32>
    %19 = vector.shape_cast %18 : vector<128xf32> to vector<1x128xf32>
    %20 = arith.mulf %13, %13 : vector<256x128xf32>
    %cst_16 = arith.constant dense<0.000000e+00> : vector<128xf32>
    %21 = vector.multi_reduction <add>, %20, %cst_16 [0] : vector<256x128xf32> to vector<128xf32>
    %22 = vector.shape_cast %21 : vector<128xf32> to vector<1x128xf32>
    %23 = tpu.concatenate %19, %22 in 0 : vector<1x128xf32>, vector<1x128xf32> -> vector<2x128xf32>
    %c0_17 = arith.constant 0 : index
    %c0_18 = arith.constant 0 : index
    %c0_19 = arith.constant 0 : index
    %24 = vector.load %arg4[%c0_17, %c0_18, %c0_19] : memref<1x2x128xf32, #tpu.memory_space<vmem>>, vector<1x2x128xf32>
    %25 = vector.shape_cast %24 : vector<1x2x128xf32> to vector<2x128xf32>
    %26 = vector.shape_cast %23 : vector<2x128xf32> to vector<1x2x128xf32>
    tpu.vector_store %arg4[%c0_17, %c0_18, %c0_19], %26 {strides = array<i32>} : memref<1x2x128xf32, #tpu.memory_space<vmem>>, vector<1x2x128xf32>,
    return
  }
  func.func @transform_0(%arg0: i32) -> (i32, i32, i32) {
    %c0_i32 = arith.constant 0 : i32
    %c0_i32_0 = arith.constant 0 : i32
    %c0_i32_1 = arith.constant 0 : i32
    return %arg0, %c0_i32, %c0_i32_0 : i32, i32, i32
  }
  func.func @transform_1(%arg0: i32) -> (i32, i32) {
    %c0_i32 = arith.constant 0 : i32
    %c0_i32_0 = arith.constant 0 : i32
    %c0_i32_1 = arith.constant 0 : i32
    return %c0_i32, %c0_i32_0 : i32, i32
  }
  func.func @transform_2(%arg0: i32) -> (i32, i32, i32) {
    %c0_i32 = arith.constant 0 : i32
    %c0_i32_0 = arith.constant 0 : i32
    %c0_i32_1 = arith.constant 0 : i32
    return %arg0, %c0_i32, %c0_i32_0 : i32, i32, i32
  }
  func.func @transform_3(%arg0: i32) -> (i32, i32, i32) {
    %c0_i32 = arith.constant 0 : i32
    %c0_i32_0 = arith.constant 0 : i32
    %c0_i32_1 = arith.constant 0 : i32
    return %arg0, %c0_i32, %c0_i32_0 : i32, i32, i32
  }
}

module attributes {stable_mosaic.version = 11 : i64} {
  func.func @_bn_relu_kernel(%arg0: i32, %arg1: memref<1x256x128xbf16, #tpu.memory_space<vmem>>, %arg2: memref<2x128xf32, #tpu.memory_space<vmem>>, %arg3: memref<1x128xf32, #tpu.memory_space<vmem>>, %arg4: memref<1x128xf32, #tpu.memory_space<vmem>>, %arg5: memref<1x256x128xbf16, #tpu.memory_space<vmem>>) attributes {dimension_semantics = [#tpu.dimension_semantics<parallel>], iteration_bounds = array<i64: 2>, scalar_prefetch = 0 : i64, scratch_operands = 0 : i64, tpu.core_type = #tpu.core_type<tc>, window_params = [{transform_indices = @transform_0, window_bounds = array<i64: 1, 256, 128>}, {pipeline_mode = #tpu.pipeline_mode<synchronous>, transform_indices = @transform_1, window_bounds = array<i64: 2, 128>}, {pipeline_mode = #tpu.pipeline_mode<synchronous>, transform_indices = @transform_2, window_bounds = array<i64: 1, 128>}, {pipeline_mode = #tpu.pipeline_mode<synchronous>, transform_indices = @transform_3, window_bounds = array<i64: 1, 128>}, {transform_indices = @transform_4, window_bounds = array<i64: 1, 256, 128>}]} {
    %c0 = arith.constant 0 : index
    %c0_0 = arith.constant 0 : index
    %0 = vector.load %arg2[%c0, %c0_0] : memref<2x128xf32, #tpu.memory_space<vmem>>, vector<1x128xf32>
    %cst = arith.constant 0.001953125 : f32
    %1 = vector.broadcast %cst : f32 to vector<1x128xf32>
    %2 = arith.mulf %0, %1 : vector<1x128xf32>
    %c1 = arith.constant 1 : index
    %c0_1 = arith.constant 0 : index
    %3 = vector.load %arg2[%c1, %c0_1] : memref<2x128xf32, #tpu.memory_space<vmem>>, vector<1x128xf32>
    %cst_2 = arith.constant 0.001953125 : f32
    %4 = vector.broadcast %cst_2 : f32 to vector<1x128xf32>
    %5 = arith.mulf %3, %4 : vector<1x128xf32>
    %6 = arith.mulf %2, %2 : vector<1x128xf32>
    %7 = arith.subf %5, %6 : vector<1x128xf32>
    %cst_3 = arith.constant 0.000000e+00 : f32
    %8 = vector.broadcast %cst_3 : f32 to vector<1x128xf32>
    %9 = arith.maximumf %7, %8 : vector<1x128xf32>
    %cst_4 = arith.constant 9.99999974E-6 : f32
    %10 = vector.broadcast %cst_4 : f32 to vector<1x128xf32>
    %11 = arith.addf %9, %10 : vector<1x128xf32>
    %12 = math.rsqrt %11 : vector<1x128xf32>
    %c0_5 = arith.constant 0 : index
    %c0_6 = arith.constant 0 : index
    %13 = vector.load %arg3[%c0_5, %c0_6] : memref<1x128xf32, #tpu.memory_space<vmem>>, vector<1x128xf32>
    %14 = arith.mulf %13, %12 : vector<1x128xf32>
    %c0_7 = arith.constant 0 : index
    %c0_8 = arith.constant 0 : index
    %15 = vector.load %arg4[%c0_7, %c0_8] : memref<1x128xf32, #tpu.memory_space<vmem>>, vector<1x128xf32>
    %16 = arith.mulf %2, %14 : vector<1x128xf32>
    %17 = arith.subf %15, %16 : vector<1x128xf32>
    %c0_9 = arith.constant 0 : index
    %c0_10 = arith.constant 0 : index
    %c0_11 = arith.constant 0 : index
    %18 = vector.load %arg1[%c0_9, %c0_10, %c0_11] : memref<1x256x128xbf16, #tpu.memory_space<vmem>>, vector<1x256x128xbf16>
    %19 = vector.shape_cast %18 : vector<1x256x128xbf16> to vector<256x128xbf16>
    %20 = arith.extf %19 : vector<256x128xbf16> to vector<256x128xf32>
    %21 = vector.broadcast %14 : vector<1x128xf32> to vector<256x128xf32>
    %22 = arith.mulf %20, %21 : vector<256x128xf32>
    %23 = vector.broadcast %17 : vector<1x128xf32> to vector<256x128xf32>
    %24 = arith.addf %22, %23 : vector<256x128xf32>
    %cst_12 = arith.constant 0.000000e+00 : f32
    %25 = vector.broadcast %cst_12 : f32 to vector<256x128xf32>
    %26 = arith.maximumf %24, %25 : vector<256x128xf32>
    %27 = arith.truncf %26 : vector<256x128xf32> to vector<256x128xbf16>
    %c0_13 = arith.constant 0 : index
    %c0_14 = arith.constant 0 : index
    %c0_15 = arith.constant 0 : index
    %28 = vector.load %arg5[%c0_13, %c0_14, %c0_15] : memref<1x256x128xbf16, #tpu.memory_space<vmem>>, vector<1x256x128xbf16>
    %29 = vector.shape_cast %28 : vector<1x256x128xbf16> to vector<256x128xbf16>
    %30 = vector.shape_cast %27 : vector<256x128xbf16> to vector<1x256x128xbf16>
    tpu.vector_store %arg5[%c0_13, %c0_14, %c0_15], %30 {strides = array<i32>} : memref<1x256x128xbf16, #tpu.memory_space<vmem>>, vector<1x256x128xbf16>,
    return
  }
  func.func @transform_0(%arg0: i32) -> (i32, i32, i32) {
    %c0_i32 = arith.constant 0 : i32
    %c0_i32_0 = arith.constant 0 : i32
    %c0_i32_1 = arith.constant 0 : i32
    return %arg0, %c0_i32, %c0_i32_0 : i32, i32, i32
  }
  func.func @transform_1(%arg0: i32) -> (i32, i32) {
    %c0_i32 = arith.constant 0 : i32
    %c0_i32_0 = arith.constant 0 : i32
    %c0_i32_1 = arith.constant 0 : i32
    return %c0_i32, %c0_i32_0 : i32, i32
  }
  func.func @transform_2(%arg0: i32) -> (i32, i32) {
    %c0_i32 = arith.constant 0 : i32
    %c0_i32_0 = arith.constant 0 : i32
    %c0_i32_1 = arith.constant 0 : i32
    return %c0_i32, %c0_i32_0 : i32, i32
  }
  func.func @transform_3(%arg0: i32) -> (i32, i32) {
    %c0_i32 = arith.constant 0 : i32
    %c0_i32_0 = arith.constant 0 : i32
    %c0_i32_1 = arith.constant 0 : i32
    return %c0_i32, %c0_i32_0 : i32, i32
  }
  func.func @transform_4(%arg0: i32) -> (i32, i32, i32) {
    %c0_i32 = arith.constant 0 : i32
    %c0_i32_0 = arith.constant 0 : i32
    %c0_i32_1 = arith.constant 0 : i32
    return %arg0, %c0_i32, %c0_i32_0 : i32, i32, i32
  }
}

module attributes {stable_mosaic.version = 11 : i64} {
  func.func @_bn_relu_pool_kernel(%arg0: i32, %arg1: i32, %arg2: memref<1x8x2x8x256xbf16, #tpu.memory_space<vmem>>, %arg3: memref<2x128xf32, #tpu.memory_space<vmem>>, %arg4: memref<1x128xf32, #tpu.memory_space<vmem>>, %arg5: memref<1x128xf32, #tpu.memory_space<vmem>>, %arg6: memref<1x8x8x128xf32, #tpu.memory_space<vmem>>) attributes {dimension_semantics = [#tpu.dimension_semantics<parallel>, #tpu.dimension_semantics<parallel>], iteration_bounds = array<i64: 2, 1>, scalar_prefetch = 0 : i64, scratch_operands = 0 : i64, tpu.core_type = #tpu.core_type<tc>, window_params = [{transform_indices = @transform_0, window_bounds = array<i64: 1, 8, 2, 8, 256>}, {pipeline_mode = #tpu.pipeline_mode<synchronous>, transform_indices = @transform_1, window_bounds = array<i64: 2, 128>}, {pipeline_mode = #tpu.pipeline_mode<synchronous>, transform_indices = @transform_2, window_bounds = array<i64: 1, 128>}, {pipeline_mode = #tpu.pipeline_mode<synchronous>, transform_indices = @transform_3, window_bounds = array<i64: 1, 128>}, {transform_indices = @transform_4, window_bounds = array<i64: 1, 8, 8, 128>}]} {
    %c0 = arith.constant 0 : index
    %c0_0 = arith.constant 0 : index
    %0 = vector.load %arg3[%c0, %c0_0] : memref<2x128xf32, #tpu.memory_space<vmem>>, vector<1x128xf32>
    %cst = arith.constant 0.001953125 : f32
    %1 = vector.broadcast %cst : f32 to vector<1x128xf32>
    %2 = arith.mulf %0, %1 : vector<1x128xf32>
    %c1 = arith.constant 1 : index
    %c0_1 = arith.constant 0 : index
    %3 = vector.load %arg3[%c1, %c0_1] : memref<2x128xf32, #tpu.memory_space<vmem>>, vector<1x128xf32>
    %cst_2 = arith.constant 0.001953125 : f32
    %4 = vector.broadcast %cst_2 : f32 to vector<1x128xf32>
    %5 = arith.mulf %3, %4 : vector<1x128xf32>
    %6 = arith.mulf %2, %2 : vector<1x128xf32>
    %7 = arith.subf %5, %6 : vector<1x128xf32>
    %cst_3 = arith.constant 0.000000e+00 : f32
    %8 = vector.broadcast %cst_3 : f32 to vector<1x128xf32>
    %9 = arith.maximumf %7, %8 : vector<1x128xf32>
    %cst_4 = arith.constant 9.99999974E-6 : f32
    %10 = vector.broadcast %cst_4 : f32 to vector<1x128xf32>
    %11 = arith.addf %9, %10 : vector<1x128xf32>
    %12 = math.rsqrt %11 : vector<1x128xf32>
    %c0_5 = arith.constant 0 : index
    %c0_6 = arith.constant 0 : index
    %13 = vector.load %arg4[%c0_5, %c0_6] : memref<1x128xf32, #tpu.memory_space<vmem>>, vector<1x128xf32>
    %14 = arith.mulf %13, %12 : vector<1x128xf32>
    %c0_7 = arith.constant 0 : index
    %c0_8 = arith.constant 0 : index
    %15 = vector.load %arg5[%c0_7, %c0_8] : memref<1x128xf32, #tpu.memory_space<vmem>>, vector<1x128xf32>
    %16 = arith.mulf %2, %14 : vector<1x128xf32>
    %17 = arith.subf %15, %16 : vector<1x128xf32>
    %18 = tpu.concatenate %14, %14 in 1 : vector<1x128xf32>, vector<1x128xf32> -> vector<1x256xf32>
    %19 = vector.shape_cast %18 : vector<1x256xf32> to vector<1x1x1x256xf32>
    %20 = tpu.concatenate %17, %17 in 1 : vector<1x128xf32>, vector<1x128xf32> -> vector<1x256xf32>
    %21 = vector.shape_cast %20 : vector<1x256xf32> to vector<1x1x1x256xf32>
    %c0_9 = arith.constant 0 : index
    %c0_10 = arith.constant 0 : index
    %c0_11 = arith.constant 0 : index
    %c0_12 = arith.constant 0 : index
    %c0_13 = arith.constant 0 : index
    %22 = vector.load %arg2[%c0_9, %c0_10, %c0_11, %c0_12, %c0_13] : memref<1x8x2x8x256xbf16, #tpu.memory_space<vmem>>, vector<1x8x2x8x256xbf16>
    %23 = vector.shape_cast %22 : vector<1x8x2x8x256xbf16> to vector<8x2x8x256xbf16>
    %24 = arith.extf %23 : vector<8x2x8x256xbf16> to vector<8x2x8x256xf32>
    %25 = vector.broadcast %19 : vector<1x1x1x256xf32> to vector<8x2x8x256xf32>
    %26 = arith.mulf %24, %25 : vector<8x2x8x256xf32>
    %27 = vector.broadcast %21 : vector<1x1x1x256xf32> to vector<8x2x8x256xf32>
    %28 = arith.addf %26, %27 : vector<8x2x8x256xf32>
    %cst_14 = arith.constant 0.000000e+00 : f32
    %29 = vector.broadcast %cst_14 : f32 to vector<8x2x8x256xf32>
    %30 = arith.maximumf %28, %29 : vector<8x2x8x256xf32>
    %31 = vector.extract_strided_slice %30 {offsets = [0, 0, 0, 0], sizes = [8, 1, 8, 128], strides = [1, 1, 1, 1]} : vector<8x2x8x256xf32> to vector<8x1x8x128xf32>
    %32 = vector.shape_cast %31 : vector<8x1x8x128xf32> to vector<8x8x128xf32>
    %33 = vector.extract_strided_slice %30 {offsets = [0, 0, 0, 128], sizes = [8, 1, 8, 128], strides = [1, 1, 1, 1]} : vector<8x2x8x256xf32> to vector<8x1x8x128xf32>
    %34 = vector.shape_cast %33 : vector<8x1x8x128xf32> to vector<8x8x128xf32>
    %35 = vector.extract_strided_slice %30 {offsets = [0, 1, 0, 0], sizes = [8, 1, 8, 128], strides = [1, 1, 1, 1]} : vector<8x2x8x256xf32> to vector<8x1x8x128xf32>
    %36 = vector.shape_cast %35 : vector<8x1x8x128xf32> to vector<8x8x128xf32>
    %37 = vector.extract_strided_slice %30 {offsets = [0, 1, 0, 128], sizes = [8, 1, 8, 128], strides = [1, 1, 1, 1]} : vector<8x2x8x256xf32> to vector<8x1x8x128xf32>
    %38 = vector.shape_cast %37 : vector<8x1x8x128xf32> to vector<8x8x128xf32>
    %39 = arith.addf %32, %34 : vector<8x8x128xf32>
    %40 = arith.addf %39, %36 : vector<8x8x128xf32>
    %41 = arith.addf %40, %38 : vector<8x8x128xf32>
    %cst_15 = arith.constant 2.500000e-01 : f32
    %42 = vector.broadcast %cst_15 : f32 to vector<8x8x128xf32>
    %43 = arith.mulf %41, %42 : vector<8x8x128xf32>
    %c0_16 = arith.constant 0 : index
    %c0_17 = arith.constant 0 : index
    %c0_18 = arith.constant 0 : index
    %c0_19 = arith.constant 0 : index
    %44 = vector.load %arg6[%c0_16, %c0_17, %c0_18, %c0_19] : memref<1x8x8x128xf32, #tpu.memory_space<vmem>>, vector<1x8x8x128xf32>
    %45 = vector.shape_cast %44 : vector<1x8x8x128xf32> to vector<8x8x128xf32>
    %46 = vector.shape_cast %43 : vector<8x8x128xf32> to vector<1x8x8x128xf32>
    tpu.vector_store %arg6[%c0_16, %c0_17, %c0_18, %c0_19], %46 {strides = array<i32>} : memref<1x8x8x128xf32, #tpu.memory_space<vmem>>, vector<1x8x8x128xf32>,
    return
  }
  func.func @transform_0(%arg0: i32, %arg1: i32) -> (i32, i32, i32, i32, i32) {
    %c0_i32 = arith.constant 0 : i32
    %c0_i32_0 = arith.constant 0 : i32
    %c0_i32_1 = arith.constant 0 : i32
    %c0_i32_2 = arith.constant 0 : i32
    return %arg0, %arg1, %c0_i32, %c0_i32_0, %c0_i32_1 : i32, i32, i32, i32, i32
  }
  func.func @transform_1(%arg0: i32, %arg1: i32) -> (i32, i32) {
    %c0_i32 = arith.constant 0 : i32
    %c0_i32_0 = arith.constant 0 : i32
    %c0_i32_1 = arith.constant 0 : i32
    return %c0_i32, %c0_i32_0 : i32, i32
  }
  func.func @transform_2(%arg0: i32, %arg1: i32) -> (i32, i32) {
    %c0_i32 = arith.constant 0 : i32
    %c0_i32_0 = arith.constant 0 : i32
    %c0_i32_1 = arith.constant 0 : i32
    return %c0_i32, %c0_i32_0 : i32, i32
  }
  func.func @transform_3(%arg0: i32, %arg1: i32) -> (i32, i32) {
    %c0_i32 = arith.constant 0 : i32
    %c0_i32_0 = arith.constant 0 : i32
    %c0_i32_1 = arith.constant 0 : i32
    return %c0_i32, %c0_i32_0 : i32, i32
  }
  func.func @transform_4(%arg0: i32, %arg1: i32) -> (i32, i32, i32, i32) {
    %c0_i32 = arith.constant 0 : i32
    %c0_i32_0 = arith.constant 0 : i32
    %c0_i32_1 = arith.constant 0 : i32
    return %arg0, %arg1, %c0_i32, %c0_i32_0 : i32, i32, i32, i32
  }
}

</mosaic_0001>

<llo_original>
// kernel: conv_block_forward.5
$region0: #{conv_block_forward.5}
  #allocation0 [shape = 'u32[]', space=smem, size = 0x4, offset = 0x4, fixed_abs, tag = 'smem constant byte address 0x4 - core index']
  #allocation1 [shape = 'u32[144,128]{1,0:T(1,128)}', space=vmem, size = 0x12000, scoped, tag = 'internal scratch']
  %s0 = inlined_call_operand.vmem [shape: bf16[2,256,128], index: 0, kind: input, shape index: {}]
  %s1 = inlined_call_operand.vmem [shape: f32[2,128], index: 1, kind: input, shape index: {}]
  %s2 = inlined_call_operand.vmem [shape: f32[1,128], index: 2, kind: input, shape index: {}]
  %s3 = inlined_call_operand.vmem [shape: f32[1,128], index: 3, kind: input, shape index: {}]
  %s4 = inlined_call_operand.vmem [shape: bf16[2,256,128], index: 4, kind: output, shape index: {}]
  %s5 = sld [smem:[#allocation0]]
  $region49: #{conv_block_forward.5} parent=0
    _
  %s7 = ssub.s32 1, %s5
  %s8 = scalar_select 0, %s7, %s5
  loop: start=0, step=1, limit=4
  $region2: #{conv_block_forward.5} parent=0 // loop_pre_header
    _
  $region3: #{conv_block_forward.5} parent=0 // loop_header
    %s10 = sphi 0, %s14
    %p11 = scmp.ge.s32.totalorder %s10, 4
    %s20 = sphi 0, %s22
    %s23 = sphi 0, %s20
    %s24 = sphi 0, %s23
    %s40 = sphi 0, %s24
    %s44 = sphi 0, %s44
    %s46 = sphi 0, %s44
    %s47 = sphi 0, %s46
    %s61 = sphi 0, %s47
    %s65 = sphi 0, %s65
    %s67 = sphi 0, %s65
    %s68 = sphi 0, %s67
    %s82 = sphi 0, %s68
    %s86 = sphi 0, %s86
    %s88 = sphi 0, %s86
    %s89 = sphi 0, %s88
    %s103 = sphi 0, %s89
    %s109 = sphi 0, %s111
    %s112 = sphi 0, %s109
    %s113 = sphi 0, %s112
    %s129 = sphi 0, %s113
  $region4: #{conv_block_forward.5} parent=0 // loop_header_branch
    %13 = sbr.rel (%p11) target = $region8
  $region5: #{conv_block_forward.5} parent=0 // loop_body
    %s15 = ssub.s32 %s10, 1
    %s16 = ssub.s32 %s10, 2
    %s17 = sadd.s32 %s10, 1
    %s18 = ssub.s32 %s10, %s17
    %p19 = scmp.eq.s32.totalorder %s18, 0
    %s21 = sadd.s32 %s20, 1
    %s22 = scalar_select %p19, %s20, %s21
    %p25 = pneg %p19
    %p26 = scmp.eq.s32.totalorder %s10, 1
    %p27 = por %p25, %p26
    %p28 = scmp.ne.s32.totalorder %s20, %s23
    %p29 = scmp.eq.s32.totalorder %s10, 0
    %p30 = por %p28, %p29
    %p31 = scmp.ne.s32.totalorder %s20, %s23
    %p32 = scmp.eq.s32.totalorder %s15, 1
    %p33 = por %p31, %p32
    %p34 = scmp.ne.s32.totalorder %s23, %s24
    %p35 = scmp.eq.s32.totalorder %s15, 0
    %p36 = por %p34, %p35
    %p37 = scmp.ne.s32.totalorder %s23, %s24
    %p38 = scmp.eq.s32.totalorder %s16, 1
    %p39 = por %p37, %p38
    %p41 = scmp.ne.s32.totalorder %s24, %s40
    %p42 = scmp.eq.s32.totalorder %s16, 0
    %p43 = por %p41, %p42
    %s45 = sadd.s32 %s44, 1
    %p48 = scmp.eq.s32.totalorder %s10, 1
    %p49 = scmp.ne.s32.totalorder %s44, %s46
    %p50 = scmp.eq.s32.totalorder %s10, 0
    %p51 = por %p49, %p50
    %p52 = scmp.ne.s32.totalorder %s44, %s46
    %p53 = scmp.eq.s32.totalorder %s15, 1
    %p54 = por %p52, %p53
    %p55 = scmp.ne.s32.totalorder %s46, %s47
    %p56 = scmp.eq.s32.totalorder %s15, 0
    %p57 = por %p55, %p56
    %p58 = scmp.ne.s32.totalorder %s46, %s47
    %p59 = scmp.eq.s32.totalorder %s16, 1
    %p60 = por %p58, %p59
    %p62 = scmp.ne.s32.totalorder %s47, %s61
    %p63 = scmp.eq.s32.totalorder %s16, 0
    %p64 = por %p62, %p63
    %s66 = sadd.s32 %s65, 1
    %p69 = scmp.eq.s32.totalorder %s10, 1
    %p70 = scmp.ne.s32.totalorder %s65, %s67
    %p71 = scmp.eq.s32.totalorder %s10, 0
    %p72 = por %p70, %p71
    %p73 = scmp.ne.s32.totalorder %s65, %s67
    %p74 = scmp.eq.s32.totalorder %s15, 1
    %p75 = por %p73, %p74
    %p76 = scmp.ne.s32.totalorder %s67, %s68
    %p77 = scmp.eq.s32.totalorder %s15, 0
    %p78 = por %p76, %p77
    %p79 = scmp.ne.s32.totalorder %s67, %s68
    %p80 = scmp.eq.s32.totalorder %s16, 1
    %p81 = por %p79, %p80
    %p83 = scmp.ne.s32.totalorder %s68, %s82
    %p84 = scmp.eq.s32.totalorder %s16, 0
    %p85 = por %p83, %p84
    %s87 = sadd.s32 %s86, 1
    %p90 = scmp.eq.s32.totalorder %s10, 1
    %p91 = scmp.ne.s32.totalorder %s86, %s88
    %p92 = scmp.eq.s32.totalorder %s10, 0
    %p93 = por %p91, %p92
    %p94 = scmp.ne.s32.totalorder %s86, %s88
    %p95 = scmp.eq.s32.totalorder %s15, 1
    %p96 = por %p94, %p95
    %p97 = scmp.ne.s32.totalorder %s88, %s89
    %p98 = scmp.eq.s32.totalorder %s15, 0
    %p99 = por %p97, %p98
    %p100 = scmp.ne.s32.totalorder %s88, %s89
    %p101 = scmp.eq.s32.totalorder %s16, 1
    %p102 = por %p100, %p101
    %p104 = scmp.ne.s32.totalorder %s89, %s103
    %p105 = scmp.eq.s32.totalorder %s16, 0
    %p106 = por %p104, %p105
    %s107 = ssub.s32 %s10, %s17
    %p108 = scmp.eq.s32.totalorder %s107, 0
    %s110 = sadd.s32 %s109, 1
    %s111 = scalar_select %p108, %s109, %s110
    %p114 = pneg %p108
    %p115 = scmp.eq.s32.totalorder %s10, 1
    %p116 = por %p114, %p115
    %p117 = scmp.ne.s32.totalorder %s109, %s112
    %p118 = scmp.eq.s32.totalorder %s10, 0
    %p119 = por %p117, %p118
    %p120 = scmp.ne.s32.totalorder %s109, %s112
    %p121 = scmp.eq.s32.totalorder %s15, 1
    %p122 = por %p120, %p121
    %p123 = scmp.ne.s32.totalorder %s112, %s113
    %p124 = scmp.eq.s32.totalorder %s15, 0
    %p125 = por %p123, %p124
    %p126 = scmp.ne.s32.totalorder %s112, %s113
    %p127 = scmp.eq.s32.totalorder %s16, 1
    %p128 = por %p126, %p127
    %p130 = scmp.ne.s32.totalorder %s113, %s129
    %p131 = scmp.eq.s32.totalorder %s16, 0
    %p132 = por %p130, %p131
    %p133 = scmp.le.s32.totalorder 1, %s10
    %p134 = scmp.lt.s32.totalorder %s10, 3
    %p135 = pnand %p133, %p134
    %p136 = pneg %p135
    // Predicated region
    $region9: #{conv_block_forward.5} parent=5 // pred_check
      _
    $region10: #{conv_block_forward.5} parent=5 // pred_check_branch
      %138 = sbr.rel (%p135) target = $region12
    $region11: #{conv_block_forward.5} parent=5 // pred_region
      %s139 = ssub.s32 %s10, 1
      // Predicated region
      $region13: #{conv_block_forward.5} parent=11 // pred_check
        %p140 = pneg %p57
      $region14: #{conv_block_forward.5} parent=11 // pred_check_branch
        %142 = sbr.rel (%p140) target = $region16
      $region15: #{conv_block_forward.5} parent=11 // pred_region
        _
      $region16: #{conv_block_forward.5} parent=11 // pred_fallthru
        _
      // Predicated region
      $region17: #{conv_block_forward.5} parent=11 // pred_check
        %p143 = pneg %p78
      $region18: #{conv_block_forward.5} parent=11 // pred_check_branch
        %145 = sbr.rel (%p143) target = $region20
      $region19: #{conv_block_forward.5} parent=11 // pred_region
        _
      $region20: #{conv_block_forward.5} parent=11 // pred_fallthru
        _
      // Predicated region
      $region21: #{conv_block_forward.5} parent=11 // pred_check
        %p146 = pneg %p99
      $region22: #{conv_block_forward.5} parent=11 // pred_check_branch
        %148 = sbr.rel (%p146) target = $region24
      $region23: #{conv_block_forward.5} parent=11 // pred_region
        _
      $region24: #{conv_block_forward.5} parent=11 // pred_fallthru
        _
    $region12: #{conv_block_forward.5} parent=5 // pred_fallthru
      _
    %p149 = scmp.lt.s32.totalorder %s10, 2
    // Predicated region
    $region25: #{conv_block_forward.5} parent=5 // pred_check
      %p150 = pneg %p149
    $region26: #{conv_block_forward.5} parent=5 // pred_check_branch
      %152 = sbr.rel (%p150) target = $region28
    $region27: #{conv_block_forward.5} parent=5 // pred_region
      // Predicated region
      $region29: #{conv_block_forward.5} parent=27 // pred_check
        %p153 = pneg %p30
      $region30: #{conv_block_forward.5} parent=27 // pred_check_branch
        %155 = sbr.rel (%p153) target = $region32
      $region31: #{conv_block_forward.5} parent=27 // pred_region
        %p156 = scmp.lt.s32.totalorder %s10, 1
        %s157 = scalar_select %p156, %s10, 1
        %s158 = smul.addr %s157, 32
        %s159 = smul.addr %s158, 4
        %s160 = scalar_lea.vmem %s0, %s159
      $region32: #{conv_block_forward.5} parent=27 // pred_fallthru
        _
    $region28: #{conv_block_forward.5} parent=5 // pred_fallthru
      _
    %p161 = scmp.le.s32.totalorder 1, %s10
    %p162 = scmp.lt.s32.totalorder %s10, 3
    %p163 = pnand %p161, %p162
    %p164 = pneg %p163
    // Predicated region
    $region33: #{conv_block_forward.5} parent=5 // pred_check
      _
    $region34: #{conv_block_forward.5} parent=5 // pred_check_branch
      %166 = sbr.rel (%p163) target = $region36
    $region35: #{conv_block_forward.5} parent=5 // pred_region
      %s167 = ssub.s32 %s10, 1
      %p168 = scmp.lt.s32.totalorder %s15, 1
      %s169 = scalar_select %p168, %s15, 1
      %s170 = smul.addr %s169, 32
      %s171 = smul.addr %s170, 4
      %s172 = scalar_lea.vmem %s0, %s171
      %p173 = pneg %p36
      %p174 = pneg %p33
      %p175 = pneg %p57
      %p176 = pneg %p54
      %p177 = pneg %p78
      %p178 = pneg %p75
      %p179 = pneg %p99
      %p180 = pneg %p96
      %p181 = pneg %p125
      %p182 = pneg %p122
      %p183 = scmp.lt.s32.totalorder %s15, 1
      %s184 = scalar_select %p183, %s15, 1
      %s185 = smul.addr %s184, 32
      %s186 = smul.addr %s185, 4
      %s187 = scalar_lea.vmem %s4, %s186
      %p188 = scmp.lt.s32.totalorder %s15, 1
      %s189 = scalar_select %p188, %s15, 1
      %s190 = smul.addr %s189, 32
      %s191 = smul.addr %s190, 4
      %s192 = scalar_lea.vmem %s0, %s191
      %p193 = scmp.lt.s32.totalorder %s15, 1
      %s194 = scalar_select %p193, %s15, 1
      %s195 = smul.addr %s194, 32
      %s196 = smul.addr %s195, 4
      %s197 = scalar_lea.vmem %s4, %s196
      %v198 = vld [vmem:[%s1] sm:$0x1]
      %v199 = vmul.f32 %v198, 0.001953125
      %v200 = vld [vmem:[%s1 + $0x1] sm:$0x1]
      %v201 = vmul.f32 %v200, 0.001953125
      %v202 = vmul.f32 %v199, %v199
      %v203 = vsub.f32 %v201, %v202
      %v204 = vmax.f32 %v203, 0.0
      %v205 = vadd.f32 %v204, 1e-05
      %v206 = vrsqrt.pop %v205
      %v207 = vld [vmem:[%s2] sm:$0x1]
      %v208 = vmul.f32 %v207, %v206
      %v209 = vld [vmem:[%s3] sm:$0x1]
      %v210 = vmul.f32 %v199, %v208
      %v211 = vsub.f32 %v209, %v210
      %v212 = vld [vmem:[%s192] sm:$0xf]
      %v213 = vld [vmem:[%s192 + $0x4] sm:$0xf]
      %v214 = vld [vmem:[%s192 + $0x8] sm:$0xf]
      %v215 = vld [vmem:[%s192 + $0xc] sm:$0xf]
      %v216 = vld [vmem:[%s192 + $0x10] sm:$0xf]
      %v217 = vld [vmem:[%s192 + $0x14] sm:$0xf]
      %v218 = vld [vmem:[%s192 + $0x18] sm:$0xf]
      %v219 = vld [vmem:[%s192 + $0x1c] sm:$0xf]
      %v220 = vld [vmem:[%s192 + $0x20] sm:$0xf]
      %v221 = vld [vmem:[%s192 + $0x24] sm:$0xf]
      %v222 = vld [vmem:[%s192 + $0x28] sm:$0xf]
      %v223 = vld [vmem:[%s192 + $0x2c] sm:$0xf]
      %v224 = vld [vmem:[%s192 + $0x30] sm:$0xf]
      %v225 = vld [vmem:[%s192 + $0x34] sm:$0xf]
      %v226 = vld [vmem:[%s192 + $0x38] sm:$0xf]
      %v227 = vld [vmem:[%s192 + $0x3c] sm:$0xf]
      %v228 = vld [vmem:[%s192 + $0x40] sm:$0xf]
      %v229 = vld [vmem:[%s192 + $0x44] sm:$0xf]
      %v230 = vld [vmem:[%s192 + $0x48] sm:$0xf]
      %v231 = vld [vmem:[%s192 + $0x4c] sm:$0xf]
      %v232 = vld [vmem:[%s192 + $0x50] sm:$0xf]
      %v233 = vld [vmem:[%s192 + $0x54] sm:$0xf]
      %v234 = vld [vmem:[%s192 + $0x58] sm:$0xf]
      %v235 = vld [vmem:[%s192 + $0x5c] sm:$0xf]
      %v236 = vld [vmem:[%s192 + $0x60] sm:$0xf]
      %v237 = vld [vmem:[%s192 + $0x64] sm:$0xf]
      %v238 = vld [vmem:[%s192 + $0x68] sm:$0xf]
      %v239 = vld [vmem:[%s192 + $0x6c] sm:$0xf]
      %v240 = vld [vmem:[%s192 + $0x70] sm:$0xf]
      %v241 = vld [vmem:[%s192 + $0x74] sm:$0xf]
      %v242 = vld [vmem:[%s192 + $0x78] sm:$0xf]
      %v243 = vld [vmem:[%s192 + $0x7c] sm:$0xf]
      %v244 = vunpack.c.l.bf16 %v212
      %v245 = vunpack.c.l.bf16 %v213
      %v246 = vunpack.c.l.bf16 %v214
      %v247 = vunpack.c.l.bf16 %v215
      %v248 = vunpack.c.l.bf16 %v216
      %v249 = vunpack.c.l.bf16 %v217
      %v250 = vunpack.c.l.bf16 %v218
      %v251 = vunpack.c.l.bf16 %v219
      %v252 = vunpack.c.l.bf16 %v220
      %v253 = vunpack.c.l.bf16 %v221
      %v254 = vunpack.c.l.bf16 %v222
      %v255 = vunpack.c.l.bf16 %v223
      %v256 = vunpack.c.l.bf16 %v224
      %v257 = vunpack.c.l.bf16 %v225
      %v258 = vunpack.c.l.bf16 %v226
      %v259 = vunpack.c.l.bf16 %v227
      %v260 = vunpack.c.l.bf16 %v228
      %v261 = vunpack.c.l.bf16 %v229
      %v262 = vunpack.c.l.bf16 %v230
      %v263 = vunpack.c.l.bf16 %v231
      %v264 = vunpack.c.l.bf16 %v232
      %v265 = vunpack.c.l.bf16 %v233
      %v266 = vunpack.c.l.bf16 %v234
      %v267 = vunpack.c.l.bf16 %v235
      %v268 = vunpack.c.l.bf16 %v236
      %v269 = vunpack.c.l.bf16 %v237
      %v270 = vunpack.c.l.bf16 %v238
      %v271 = vunpack.c.l.bf16 %v239
      %v272 = vunpack.c.l.bf16 %v240
      %v273 = vunpack.c.l.bf16 %v241
      %v274 = vunpack.c.l.bf16 %v242
      %v275 = vunpack.c.l.bf16 %v243
      %v277 = vlaneseq
      %v278 = vshrl.u32 %v277, 7
      %v279 = vsub.s32 0, %v278
      %v280 = vrot.slane %v208, %v279
      %v282 = vmul.f32 %v244, %v280
      %v283 = vmul.f32 %v245, %v280
      %v284 = vmul.f32 %v246, %v280
      %v285 = vmul.f32 %v247, %v280
      %v286 = vmul.f32 %v248, %v280
      %v287 = vmul.f32 %v249, %v280
      %v288 = vmul.f32 %v250, %v280
      %v289 = vmul.f32 %v251, %v280
      %v290 = vmul.f32 %v252, %v280
      %v291 = vmul.f32 %v253, %v280
      %v292 = vmul.f32 %v254, %v280
      %v293 = vmul.f32 %v255, %v280
      %v294 = vmul.f32 %v256, %v280
      %v295 = vmul.f32 %v257, %v280
      %v296 = vmul.f32 %v258, %v280
      %v297 = vmul.f32 %v259, %v280
      %v298 = vmul.f32 %v260, %v280
      %v299 = vmul.f32 %v261, %v280
      %v300 = vmul.f32 %v262, %v280
      %v301 = vmul.f32 %v263, %v280
      %v302 = vmul.f32 %v264, %v280
      %v303 = vmul.f32 %v265, %v280
      %v304 = vmul.f32 %v266, %v280
      %v305 = vmul.f32 %v267, %v280
      %v306 = vmul.f32 %v268, %v280
      %v307 = vmul.f32 %v269, %v280
      %v308 = vmul.f32 %v270, %v280
      %v309 = vmul.f32 %v271, %v280
      %v310 = vmul.f32 %v272, %v280
      %v311 = vmul.f32 %v273, %v280
      %v312 = vmul.f32 %v274, %v280
      %v313 = vmul.f32 %v275, %v280
      %v315 = vlaneseq
      %v316 = vshrl.u32 %v315, 7
      %v317 = vsub.s32 0, %v316
      %v318 = vrot.slane %v211, %v317
      %v320 = vadd.f32 %v282, %v318
      %v321 = vadd.f32 %v283, %v318
      %v322 = vadd.f32 %v284, %v318
      %v323 = vadd.f32 %v285, %v318
      %v324 = vadd.f32 %v286, %v318
      %v325 = vadd.f32 %v287, %v318
      %v326 = vadd.f32 %v288, %v318
      %v327 = vadd.f32 %v289, %v318
      %v328 = vadd.f32 %v290, %v318
      %v329 = vadd.f32 %v291, %v318
      %v330 = vadd.f32 %v292, %v318
      %v331 = vadd.f32 %v293, %v318
      %v332 = vadd.f32 %v294, %v318
      %v333 = vadd.f32 %v295, %v318
      %v334 = vadd.f32 %v296, %v318
      %v335 = vadd.f32 %v297, %v318
      %v336 = vadd.f32 %v298, %v318
      %v337 = vadd.f32 %v299, %v318
      %v338 = vadd.f32 %v300, %v318
      %v339 = vadd.f32 %v301, %v318
      %v340 = vadd.f32 %v302, %v318
      %v341 = vadd.f32 %v303, %v318
      %v342 = vadd.f32 %v304, %v318
      %v343 = vadd.f32 %v305, %v318
      %v344 = vadd.f32 %v306, %v318
      %v345 = vadd.f32 %v307, %v318
      %v346 = vadd.f32 %v308, %v318
      %v347 = vadd.f32 %v309, %v318
      %v348 = vadd.f32 %v310, %v318
      %v349 = vadd.f32 %v311, %v318
      %v350 = vadd.f32 %v312, %v318
      %v351 = vadd.f32 %v313, %v318
      %v352 = vmax.f32 %v320, 0.0
      %v353 = vmax.f32 %v321, 0.0
      %v354 = vmax.f32 %v322, 0.0
      %v355 = vmax.f32 %v323, 0.0
      %v356 = vmax.f32 %v324, 0.0
      %v357 = vmax.f32 %v325, 0.0
      %v358 = vmax.f32 %v326, 0.0
      %v359 = vmax.f32 %v327, 0.0
      %v360 = vmax.f32 %v328, 0.0
      %v361 = vmax.f32 %v329, 0.0
      %v362 = vmax.f32 %v330, 0.0
      %v363 = vmax.f32 %v331, 0.0
      %v364 = vmax.f32 %v332, 0.0
      %v365 = vmax.f32 %v333, 0.0
      %v366 = vmax.f32 %v334, 0.0
      %v367 = vmax.f32 %v335, 0.0
      %v368 = vmax.f32 %v336, 0.0
      %v369 = vmax.f32 %v337, 0.0
      %v370 = vmax.f32 %v338, 0.0
      %v371 = vmax.f32 %v339, 0.0
      %v372 = vmax.f32 %v340, 0.0
      %v373 = vmax.f32 %v341, 0.0
      %v374 = vmax.f32 %v342, 0.0
      %v375 = vmax.f32 %v343, 0.0
      %v376 = vmax.f32 %v344, 0.0
      %v377 = vmax.f32 %v345, 0.0
      %v378 = vmax.f32 %v346, 0.0
      %v379 = vmax.f32 %v347, 0.0
      %v380 = vmax.f32 %v348, 0.0
      %v381 = vmax.f32 %v349, 0.0
      %v382 = vmax.f32 %v350, 0.0
      %v383 = vmax.f32 %v351, 0.0
      %v384 = vpack.c.bf16 %v353, %v352
      %v385 = vpack.c.bf16 %v355, %v354
      %v386 = vpack.c.bf16 %v357, %v356
      %v387 = vpack.c.bf16 %v359, %v358
      %v388 = vpack.c.bf16 %v361, %v360
      %v389 = vpack.c.bf16 %v363, %v362
      %v390 = vpack.c.bf16 %v365, %v364
      %v391 = vpack.c.bf16 %v367, %v366
      %v392 = vpack.c.bf16 %v369, %v368
      %v393 = vpack.c.bf16 %v371, %v370
      %v394 = vpack.c.bf16 %v373, %v372
      %v395 = vpack.c.bf16 %v375, %v374
      %v396 = vpack.c.bf16 %v377, %v376
      %v397 = vpack.c.bf16 %v379, %v378
      %v398 = vpack.c.bf16 %v381, %v380
      %v399 = vpack.c.bf16 %v383, %v382
      %v416 = vunpack.c.l.b16 %v384
      %v417 = vunpack.c.h.b16 %v384
      %v418 = vunpack.c.l.b16 %v385
      %v419 = vunpack.c.h.b16 %v385
      %v420 = vunpack.c.l.b16 %v386
      %v421 = vunpack.c.h.b16 %v386
      %v422 = vunpack.c.l.b16 %v387
      %v423 = vunpack.c.h.b16 %v387
      %v424 = vunpack.c.l.b16 %v388
      %v425 = vunpack.c.h.b16 %v388
      %v426 = vunpack.c.l.b16 %v389
      %v427 = vunpack.c.h.b16 %v389
      %v428 = vunpack.c.l.b16 %v390
      %v429 = vunpack.c.h.b16 %v390
      %v430 = vunpack.c.l.b16 %v391
      %v431 = vunpack.c.h.b16 %v391
      %v432 = vunpack.c.l.b16 %v392
      %v433 = vunpack.c.h.b16 %v392
      %v434 = vunpack.c.l.b16 %v393
      %v435 = vunpack.c.h.b16 %v393
      %v436 = vunpack.c.l.b16 %v394
      %v437 = vunpack.c.h.b16 %v394
      %v438 = vunpack.c.l.b16 %v395
      %v439 = vunpack.c.h.b16 %v395
      %v440 = vunpack.c.l.b16 %v396
      %v441 = vunpack.c.h.b16 %v396
      %v442 = vunpack.c.l.b16 %v397
      %v443 = vunpack.c.h.b16 %v397
      %v444 = vunpack.c.l.b16 %v398
      %v445 = vunpack.c.h.b16 %v398
      %v446 = vunpack.c.l.b16 %v399
      %v447 = vunpack.c.h.b16 %v399
      %v448 = vpack.c.b16 %v416, %v416
      %v449 = vpack.c.b16 %v417, %v417
      %v450 = vpack.c.b16 %v418, %v418
      %v451 = vpack.c.b16 %v419, %v419
      %v452 = vpack.c.b16 %v420, %v420
      %v453 = vpack.c.b16 %v421, %v421
      %v454 = vpack.c.b16 %v422, %v422
      %v455 = vpack.c.b16 %v423, %v423
      %v456 = vpack.c.b16 %v424, %v424
      %v457 = vpack.c.b16 %v425, %v425
      %v458 = vpack.c.b16 %v426, %v426
      %v459 = vpack.c.b16 %v427, %v427
      %v460 = vpack.c.b16 %v428, %v428
      %v461 = vpack.c.b16 %v429, %v429
      %v462 = vpack.c.b16 %v430, %v430
      %v463 = vpack.c.b16 %v431, %v431
      %v464 = vpack.c.b16 %v432, %v432
      %v465 = vpack.c.b16 %v433, %v433
      %v466 = vpack.c.b16 %v434, %v434
      %v467 = vpack.c.b16 %v435, %v435
      %v468 = vpack.c.b16 %v436, %v436
      %v469 = vpack.c.b16 %v437, %v437
      %v470 = vpack.c.b16 %v438, %v438
      %v471 = vpack.c.b16 %v439, %v439
      %v472 = vpack.c.b16 %v440, %v440
      %v473 = vpack.c.b16 %v441, %v441
      %v474 = vpack.c.b16 %v442, %v442
      %v475 = vpack.c.b16 %v443, %v443
      %v476 = vpack.c.b16 %v444, %v444
      %v477 = vpack.c.b16 %v445, %v445
      %v478 = vpack.c.b16 %v446, %v446
      %v479 = vpack.c.b16 %v447, %v447
      %512 = vst [vmem:[%s197] sm:$0xf] %v448
      %513 = vst [vmem:[%s197 + $0x4] sm:$0xf] %v449
      %514 = vst [vmem:[%s197 + $0x8] sm:$0xf] %v450
      %515 = vst [vmem:[%s197 + $0xc] sm:$0xf] %v451
      %516 = vst [vmem:[%s197 + $0x10] sm:$0xf] %v452
      %517 = vst [vmem:[%s197 + $0x14] sm:$0xf] %v453
      %518 = vst [vmem:[%s197 + $0x18] sm:$0xf] %v454
      %519 = vst [vmem:[%s197 + $0x1c] sm:$0xf] %v455
      %520 = vst [vmem:[%s197 + $0x20] sm:$0xf] %v456
      %521 = vst [vmem:[%s197 + $0x24] sm:$0xf] %v457
      %522 = vst [vmem:[%s197 + $0x28] sm:$0xf] %v458
      %523 = vst [vmem:[%s197 + $0x2c] sm:$0xf] %v459
      %524 = vst [vmem:[%s197 + $0x30] sm:$0xf] %v460
      %525 = vst [vmem:[%s197 + $0x34] sm:$0xf] %v461
      %526 = vst [vmem:[%s197 + $0x38] sm:$0xf] %v462
      %527 = vst [vmem:[%s197 + $0x3c] sm:$0xf] %v463
      %528 = vst [vmem:[%s197 + $0x40] sm:$0xf] %v464
      %529 = vst [vmem:[%s197 + $0x44] sm:$0xf] %v465
      %530 = vst [vmem:[%s197 + $0x48] sm:$0xf] %v466
      %531 = vst [vmem:[%s197 + $0x4c] sm:$0xf] %v467
      %532 = vst [vmem:[%s197 + $0x50] sm:$0xf] %v468
      %533 = vst [vmem:[%s197 + $0x54] sm:$0xf] %v469
      %534 = vst [vmem:[%s197 + $0x58] sm:$0xf] %v470
      %535 = vst [vmem:[%s197 + $0x5c] sm:$0xf] %v471
      %536 = vst [vmem:[%s197 + $0x60] sm:$0xf] %v472
      %537 = vst [vmem:[%s197 + $0x64] sm:$0xf] %v473
      %538 = vst [vmem:[%s197 + $0x68] sm:$0xf] %v474
      %539 = vst [vmem:[%s197 + $0x6c] sm:$0xf] %v475
      %540 = vst [vmem:[%s197 + $0x70] sm:$0xf] %v476
      %541 = vst [vmem:[%s197 + $0x74] sm:$0xf] %v477
      %542 = vst [vmem:[%s197 + $0x78] sm:$0xf] %v478
      %543 = vst [vmem:[%s197 + $0x7c] sm:$0xf] %v479
      %p544 = scmp.lt.s32.totalorder %s15, 1
      %s545 = scalar_select %p544, %s15, 1
      %s546 = smul.addr %s545, 32
      %s547 = smul.addr %s546, 4
      %s548 = scalar_lea.vmem %s4, %s547
      // Predicated region
      $region37: #{conv_block_forward.5} parent=35 // pred_check
        %p549 = pneg %p122
      $region38: #{conv_block_forward.5} parent=35 // pred_check_branch
        %551 = sbr.rel (%p549) target = $region40
      $region39: #{conv_block_forward.5} parent=35 // pred_region
        _
      $region40: #{conv_block_forward.5} parent=35 // pred_fallthru
        _
    $region36: #{conv_block_forward.5} parent=5 // pred_fallthru
      _
    %p552 = scmp.le.s32.totalorder 2, %s10
    // Predicated region
    $region41: #{conv_block_forward.5} parent=5 // pred_check
      %p553 = pneg %p552
    $region42: #{conv_block_forward.5} parent=5 // pred_check_branch
      %555 = sbr.rel (%p553) target = $region44
    $region43: #{conv_block_forward.5} parent=5 // pred_region
      %s556 = ssub.s32 %s10, 2
      // Predicated region
      $region45: #{conv_block_forward.5} parent=43 // pred_check
        %p557 = pneg %p128
      $region46: #{conv_block_forward.5} parent=43 // pred_check_branch
        %559 = sbr.rel (%p557) target = $region48
      $region47: #{conv_block_forward.5} parent=43 // pred_region
        %p560 = scmp.lt.s32.totalorder %s16, 1
        %s561 = scalar_select %p560, %s16, 1
        %s562 = smul.addr %s561, 32
        %s563 = smul.addr %s562, 4
        %s564 = scalar_lea.vmem %s4, %s563
      $region48: #{conv_block_forward.5} parent=43 // pred_fallthru
        _
    $region44: #{conv_block_forward.5} parent=5 // pred_fallthru
      _
  $region6: #{conv_block_forward.5} parent=0 // loop_footer
    %s14 = sadd.s32 1, %s10
  $region7: #{conv_block_forward.5} parent=0 // loop_footer_branch
    %9 = sbr.rel target = $region3
  $region8: #{conv_block_forward.5} parent=0 // loop_exit
    _

// kernel: conv_block_forward.4
$region0: #{conv_block_forward.4}
  #allocation0 [shape = 'u32[]', space=smem, size = 0x4, offset = 0x4, fixed_abs, tag = 'smem constant byte address 0x4 - core index']
  #allocation1 [shape = 'u32[144,128]{1,0:T(1,128)}', space=vmem, size = 0x12000, scoped, tag = 'internal scratch']
  %s0 = inlined_call_operand.vmem [shape: bf16[2,288,128], index: 0, kind: input, shape index: {}]
  %s1 = inlined_call_operand.vmem [shape: bf16[384,128], index: 1, kind: input, shape index: {}]
  %s2 = inlined_call_operand.vmem [shape: bf16[2,256,128], index: 2, kind: output, shape index: {0}]
  %s3 = inlined_call_operand.vmem [shape: f32[2,2,128], index: 3, kind: output, shape index: {1}]
  %4 = xla_tuple %s2, %s3
  %s5 = sld [smem:[#allocation0]]
  $region49: #{conv_block_forward.4} parent=0
    _
  %s7 = ssub.s32 1, %s5
  %s8 = scalar_select 0, %s7, %s5
  loop: start=0, step=1, limit=4
  $region2: #{conv_block_forward.4} parent=0 // loop_pre_header
    _
  $region3: #{conv_block_forward.4} parent=0 // loop_header
    %s10 = sphi 0, %s14
    %p11 = scmp.ge.s32.totalorder %s10, 4
    %s20 = sphi 0, %s22
    %s23 = sphi 0, %s20
    %s24 = sphi 0, %s23
    %s40 = sphi 0, %s24
    %s44 = sphi 0, %s44
    %s46 = sphi 0, %s44
    %s47 = sphi 0, %s46
    %s61 = sphi 0, %s47
    %s67 = sphi 0, %s69
    %s70 = sphi 0, %s67
    %s71 = sphi 0, %s70
    %s87 = sphi 0, %s71
    %s93 = sphi 0, %s95
    %s96 = sphi 0, %s93
    %s97 = sphi 0, %s96
    %s113 = sphi 0, %s97
  $region4: #{conv_block_forward.4} parent=0 // loop_header_branch
    %13 = sbr.rel (%p11) target = $region8
  $region5: #{conv_block_forward.4} parent=0 // loop_body
    %s15 = ssub.s32 %s10, 1
    %s16 = ssub.s32 %s10, 2
    %s17 = sadd.s32 %s10, 1
    %s18 = ssub.s32 %s10, %s17
    %p19 = scmp.eq.s32.totalorder %s18, 0
    %s21 = sadd.s32 %s20, 1
    %s22 = scalar_select %p19, %s20, %s21
    %p25 = pneg %p19
    %p26 = scmp.eq.s32.totalorder %s10, 1
    %p27 = por %p25, %p26
    %p28 = scmp.ne.s32.totalorder %s20, %s23
    %p29 = scmp.eq.s32.totalorder %s10, 0
    %p30 = por %p28, %p29
    %p31 = scmp.ne.s32.totalorder %s20, %s23
    %p32 = scmp.eq.s32.totalorder %s15, 1
    %p33 = por %p31, %p32
    %p34 = scmp.ne.s32.totalorder %s23, %s24
    %p35 = scmp.eq.s32.totalorder %s15, 0
    %p36 = por %p34, %p35
    %p37 = scmp.ne.s32.totalorder %s23, %s24
    %p38 = scmp.eq.s32.totalorder %s16, 1
    %p39 = por %p37, %p38
    %p41 = scmp.ne.s32.totalorder %s24, %s40
    %p42 = scmp.eq.s32.totalorder %s16, 0
    %p43 = por %p41, %p42
    %s45 = sadd.s32 %s44, 1
    %p48 = scmp.eq.s32.totalorder %s10, 1
    %p49 = scmp.ne.s32.totalorder %s44, %s46
    %p50 = scmp.eq.s32.totalorder %s10, 0
    %p51 = por %p49, %p50
    %p52 = scmp.ne.s32.totalorder %s44, %s46
    %p53 = scmp.eq.s32.totalorder %s15, 1
    %p54 = por %p52, %p53
    %p55 = scmp.ne.s32.totalorder %s46, %s47
    %p56 = scmp.eq.s32.totalorder %s15, 0
    %p57 = por %p55, %p56
    %p58 = scmp.ne.s32.totalorder %s46, %s47
    %p59 = scmp.eq.s32.totalorder %s16, 1
    %p60 = por %p58, %p59
    %p62 = scmp.ne.s32.totalorder %s47, %s61
    %p63 = scmp.eq.s32.totalorder %s16, 0
    %p64 = por %p62, %p63
    %s65 = ssub.s32 %s10, %s17
    %p66 = scmp.eq.s32.totalorder %s65, 0
    %s68 = sadd.s32 %s67, 1
    %s69 = scalar_select %p66, %s67, %s68
    %p72 = pneg %p66
    %p73 = scmp.eq.s32.totalorder %s10, 1
    %p74 = por %p72, %p73
    %p75 = scmp.ne.s32.totalorder %s67, %s70
    %p76 = scmp.eq.s32.totalorder %s10, 0
    %p77 = por %p75, %p76
    %p78 = scmp.ne.s32.totalorder %s67, %s70
    %p79 = scmp.eq.s32.totalorder %s15, 1
    %p80 = por %p78, %p79
    %p81 = scmp.ne.s32.totalorder %s70, %s71
    %p82 = scmp.eq.s32.totalorder %s15, 0
    %p83 = por %p81, %p82
    %p84 = scmp.ne.s32.totalorder %s70, %s71
    %p85 = scmp.eq.s32.totalorder %s16, 1
    %p86 = por %p84, %p85
    %p88 = scmp.ne.s32.totalorder %s71, %s87
    %p89 = scmp.eq.s32.totalorder %s16, 0
    %p90 = por %p88, %p89
    %s91 = ssub.s32 %s10, %s17
    %p92 = scmp.eq.s32.totalorder %s91, 0
    %s94 = sadd.s32 %s93, 1
    %s95 = scalar_select %p92, %s93, %s94
    %p98 = pneg %p92
    %p99 = scmp.eq.s32.totalorder %s10, 1
    %p100 = por %p98, %p99
    %p101 = scmp.ne.s32.totalorder %s93, %s96
    %p102 = scmp.eq.s32.totalorder %s10, 0
    %p103 = por %p101, %p102
    %p104 = scmp.ne.s32.totalorder %s93, %s96
    %p105 = scmp.eq.s32.totalorder %s15, 1
    %p106 = por %p104, %p105
    %p107 = scmp.ne.s32.totalorder %s96, %s97
    %p108 = scmp.eq.s32.totalorder %s15, 0
    %p109 = por %p107, %p108
    %p110 = scmp.ne.s32.totalorder %s96, %s97
    %p111 = scmp.eq.s32.totalorder %s16, 1
    %p112 = por %p110, %p111
    %p114 = scmp.ne.s32.totalorder %s97, %s113
    %p115 = scmp.eq.s32.totalorder %s16, 0
    %p116 = por %p114, %p115
    %p117 = scmp.le.s32.totalorder 1, %s10
    %p118 = scmp.lt.s32.totalorder %s10, 3
    %p119 = pnand %p117, %p118
    %p120 = pneg %p119
    // Predicated region
    $region9: #{conv_block_forward.4} parent=5 // pred_check
      _
    $region10: #{conv_block_forward.4} parent=5 // pred_check_branch
      %122 = sbr.rel (%p119) target = $region12
    $region11: #{conv_block_forward.4} parent=5 // pred_region
      %s123 = ssub.s32 %s10, 1
      // Predicated region
      $region13: #{conv_block_forward.4} parent=11 // pred_check
        %p124 = pneg %p57
      $region14: #{conv_block_forward.4} parent=11 // pred_check_branch
        %126 = sbr.rel (%p124) target = $region16
      $region15: #{conv_block_forward.4} parent=11 // pred_region
        _
      $region16: #{conv_block_forward.4} parent=11 // pred_fallthru
        _
    $region12: #{conv_block_forward.4} parent=5 // pred_fallthru
      _
    %p127 = scmp.lt.s32.totalorder %s10, 2
    // Predicated region
    $region17: #{conv_block_forward.4} parent=5 // pred_check
      %p128 = pneg %p127
    $region18: #{conv_block_forward.4} parent=5 // pred_check_branch
      %130 = sbr.rel (%p128) target = $region20
    $region19: #{conv_block_forward.4} parent=5 // pred_region
      // Predicated region
      $region21: #{conv_block_forward.4} parent=19 // pred_check
        %p131 = pneg %p30
      $region22: #{conv_block_forward.4} parent=19 // pred_check_branch
        %133 = sbr.rel (%p131) target = $region24
      $region23: #{conv_block_forward.4} parent=19 // pred_region
        %p134 = scmp.lt.s32.totalorder %s10, 1
        %s135 = scalar_select %p134, %s10, 1
        %s136 = smul.addr %s135, 36
        %s137 = smul.addr %s136, 4
        %s138 = scalar_lea.vmem %s0, %s137
      $region24: #{conv_block_forward.4} parent=19 // pred_fallthru
        _
    $region20: #{conv_block_forward.4} parent=5 // pred_fallthru
      _
    %p139 = scmp.le.s32.totalorder 1, %s10
    %p140 = scmp.lt.s32.totalorder %s10, 3
    %p141 = pnand %p139, %p140
    %p142 = pneg %p141
    // Predicated region
    $region25: #{conv_block_forward.4} parent=5 // pred_check
      _
    $region26: #{conv_block_forward.4} parent=5 // pred_check_branch
      %144 = sbr.rel (%p141) target = $region28
    $region27: #{conv_block_forward.4} parent=5 // pred_region
      %s145 = ssub.s32 %s10, 1
      %p146 = scmp.lt.s32.totalorder %s15, 1
      %s147 = scalar_select %p146, %s15, 1
      %s148 = smul.addr %s147, 36
      %s149 = smul.addr %s148, 4
      %s150 = scalar_lea.vmem %s0, %s149
      %p151 = pneg %p36
      %p152 = pneg %p33
      %p153 = pneg %p57
      %p154 = pneg %p54
      %p155 = pneg %p83
      %p156 = pneg %p80
      %p157 = scmp.lt.s32.totalorder %s15, 1
      %s158 = scalar_select %p157, %s15, 1
      %s159 = smul.addr %s158, 32
      %s160 = smul.addr %s159, 4
      %s161 = scalar_lea.vmem %s2, %s160
      %p162 = pneg %p109
      %p163 = pneg %p106
      %p164 = scmp.lt.s32.totalorder %s15, 1
      %s165 = scalar_select %p164, %s15, 1
      %s166 = smul.addr %s165, 2
      %s167 = scalar_lea.vmem %s3, %s166
      %p168 = scmp.lt.s32.totalorder %s15, 1
      %s169 = scalar_select %p168, %s15, 1
      %s170 = smul.addr %s169, 36
      %s171 = smul.addr %s170, 4
      %s172 = scalar_lea.vmem %s0, %s171
      %p173 = scmp.lt.s32.totalorder %s15, 1
      %s174 = scalar_select %p173, %s15, 1
      %s175 = smul.addr %s174, 32
      %s176 = smul.addr %s175, 4
      %s177 = scalar_lea.vmem %s2, %s176
      %p178 = scmp.lt.s32.totalorder %s15, 1
      %s179 = scalar_select %p178, %s15, 1
      %s180 = smul.addr %s179, 2
      %s181 = scalar_lea.vmem %s3, %s180
      %v183 = vld [vmem:[%s172] sm:$0xf]
      %v184 = vld [vmem:[%s172 + $0x4] sm:$0xf]
      %v185 = vld [vmem:[%s172 + $0x8] sm:$0xf]
      %v186 = vld [vmem:[%s172 + $0xc] sm:$0xf]
      %v187 = vld [vmem:[%s172 + $0x10] sm:$0xf]
      %v188 = vld [vmem:[%s172 + $0x14] sm:$0xf]
      %v189 = vld [vmem:[%s172 + $0x18] sm:$0xf]
      %v190 = vld [vmem:[%s172 + $0x1c] sm:$0xf]
      %v191 = vld [vmem:[%s172 + $0x20] sm:$0xf]
      %v192 = vld [vmem:[%s172 + $0x24] sm:$0xf]
      %v193 = vld [vmem:[%s172 + $0x28] sm:$0xf]
      %v194 = vld [vmem:[%s172 + $0x2c] sm:$0xf]
      %v195 = vld [vmem:[%s172 + $0x30] sm:$0xf]
      %v196 = vld [vmem:[%s172 + $0x34] sm:$0xf]
      %v197 = vld [vmem:[%s172 + $0x38] sm:$0xf]
      %v198 = vld [vmem:[%s172 + $0x3c] sm:$0xf]
      %v199 = vld [vmem:[%s172 + $0x40] sm:$0xf]
      %v200 = vld [vmem:[%s172 + $0x44] sm:$0xf]
      %v201 = vld [vmem:[%s172 + $0x48] sm:$0xf]
      %v202 = vld [vmem:[%s172 + $0x4c] sm:$0xf]
      %v203 = vld [vmem:[%s172 + $0x50] sm:$0xf]
      %v204 = vld [vmem:[%s172 + $0x54] sm:$0xf]
      %v205 = vld [vmem:[%s172 + $0x58] sm:$0xf]
      %v206 = vld [vmem:[%s172 + $0x5c] sm:$0xf]
      %v207 = vld [vmem:[%s172 + $0x60] sm:$0xf]
      %v208 = vld [vmem:[%s172 + $0x64] sm:$0xf]
      %v209 = vld [vmem:[%s172 + $0x68] sm:$0xf]
      %v210 = vld [vmem:[%s172 + $0x6c] sm:$0xf]
      %v211 = vld [vmem:[%s172 + $0x70] sm:$0xf]
      %v212 = vld [vmem:[%s172 + $0x74] sm:$0xf]
      %v213 = vld [vmem:[%s172 + $0x78] sm:$0xf]
      %v214 = vld [vmem:[%s172 + $0x7c] sm:$0xf]
      %v215 = vld [vmem:[%s1] sm:$0xf]
      %v216 = vld [vmem:[%s1 + $0x4] sm:$0xf]
      %v217 = vld [vmem:[%s1 + $0x8] sm:$0xf]
      %v218 = vld [vmem:[%s1 + $0xc] sm:$0xf]
      %v219 = vld [vmem:[%s1 + $0x10] sm:$0xf]
      %v220 = vld [vmem:[%s1 + $0x14] sm:$0xf]
      %v221 = vld [vmem:[%s1 + $0x18] sm:$0xf]
      %v222 = vld [vmem:[%s1 + $0x1c] sm:$0xf]
      %v223 = vld [vmem:[%s1 + $0x20] sm:$0xf]
      %v224 = vld [vmem:[%s1 + $0x24] sm:$0xf]
      %v225 = vld [vmem:[%s1 + $0x28] sm:$0xf]
      %v226 = vld [vmem:[%s1 + $0x2c] sm:$0xf]
      %v227 = vld [vmem:[%s1 + $0x30] sm:$0xf]
      %v228 = vld [vmem:[%s1 + $0x34] sm:$0xf]
      %v229 = vld [vmem:[%s1 + $0x38] sm:$0xf]
      %v230 = vld [vmem:[%s1 + $0x3c] sm:$0xf]
      %v231 = vld [vmem:[%s172 + $0x80] sm:$0xf]
      %v232 = vld [vmem:[%s172 + $0x84] sm:$0xf]
      %v233 = vld [vmem:[%s1 + $0x40] sm:$0xf]
      %v234 = vld [vmem:[%s1 + $0x44] sm:$0xf]
      %v235 = vld [vmem:[%s1 + $0x48] sm:$0xf]
      %v236 = vld [vmem:[%s1 + $0x4c] sm:$0xf]
      %v237 = vld [vmem:[%s1 + $0x50] sm:$0xf]
      %v238 = vld [vmem:[%s1 + $0x54] sm:$0xf]
      %v239 = vld [vmem:[%s1 + $0x58] sm:$0xf]
      %v240 = vld [vmem:[%s1 + $0x5c] sm:$0xf]
      %v241 = vld [vmem:[%s1 + $0x60] sm:$0xf]
      %v242 = vld [vmem:[%s1 + $0x64] sm:$0xf]
      %v243 = vld [vmem:[%s1 + $0x68] sm:$0xf]
      %v244 = vld [vmem:[%s1 + $0x6c] sm:$0xf]
      %v245 = vld [vmem:[%s1 + $0x70] sm:$0xf]
      %v246 = vld [vmem:[%s1 + $0x74] sm:$0xf]
      %v247 = vld [vmem:[%s1 + $0x78] sm:$0xf]
      %v248 = vld [vmem:[%s1 + $0x7c] sm:$0xf]
      %v281 = vunpack.c.l.b16 %v185
      %v282 = vunpack.c.l.b16 %v186
      %v283 = vunpack.c.l.b16 %v187
      %v284 = vunpack.c.l.b16 %v188
      %v285 = vunpack.c.l.b16 %v189
      %v286 = vunpack.c.l.b16 %v190
      %v287 = vunpack.c.l.b16 %v191
      %v288 = vunpack.c.l.b16 %v192
      %v289 = vunpack.c.l.b16 %v193
      %v290 = vunpack.c.l.b16 %v194
      %v291 = vunpack.c.l.b16 %v195
      %v292 = vunpack.c.l.b16 %v196
      %v293 = vunpack.c.l.b16 %v197
      %v294 = vunpack.c.l.b16 %v198
      %v295 = vunpack.c.l.b16 %v199
      %v296 = vunpack.c.l.b16 %v200
      %v297 = vunpack.c.l.b16 %v201
      %v298 = vunpack.c.l.b16 %v202
      %v299 = vunpack.c.l.b16 %v203
      %v300 = vunpack.c.l.b16 %v204
      %v301 = vunpack.c.l.b16 %v205
      %v302 = vunpack.c.l.b16 %v206
      %v303 = vunpack.c.l.b16 %v207
      %v304 = vunpack.c.l.b16 %v208
      %v305 = vunpack.c.l.b16 %v209
      %v306 = vunpack.c.l.b16 %v210
      %v307 = vunpack.c.l.b16 %v211
      %v308 = vunpack.c.l.b16 %v212
      %v309 = vunpack.c.l.b16 %v213
      %v310 = vunpack.c.l.b16 %v214
      %v311 = vunpack.c.l.b16 %v231
      %v312 = vunpack.c.l.b16 %v232
      %v313 = vpack.c.b16 %v282, %v281
      %v314 = vpack.c.b16 %v284, %v283
      %v315 = vpack.c.b16 %v286, %v285
      %v316 = vpack.c.b16 %v288, %v287
      %v317 = vpack.c.b16 %v290, %v289
      %v318 = vpack.c.b16 %v292, %v291
      %v319 = vpack.c.b16 %v294, %v293
      %v320 = vpack.c.b16 %v296, %v295
      %v321 = vpack.c.b16 %v298, %v297
      %v322 = vpack.c.b16 %v300, %v299
      %v323 = vpack.c.b16 %v302, %v301
      %v324 = vpack.c.b16 %v304, %v303
      %v325 = vpack.c.b16 %v306, %v305
      %v326 = vpack.c.b16 %v308, %v307
      %v327 = vpack.c.b16 %v310, %v309
      %v328 = vpack.c.b16 %v312, %v311
      %v361 = vunpack.c.l.b16 %v233
      %v362 = vunpack.c.l.b16 %v234
      %v363 = vunpack.c.l.b16 %v235
      %v364 = vunpack.c.l.b16 %v236
      %v365 = vunpack.c.l.b16 %v237
      %v366 = vunpack.c.l.b16 %v238
      %v367 = vunpack.c.l.b16 %v239
      %v368 = vunpack.c.l.b16 %v240
      %v369 = vunpack.c.l.b16 %v241
      %v370 = vunpack.c.l.b16 %v242
      %v371 = vunpack.c.l.b16 %v243
      %v372 = vunpack.c.l.b16 %v244
      %v373 = vunpack.c.l.b16 %v245
      %v374 = vunpack.c.l.b16 %v246
      %v375 = vunpack.c.l.b16 %v247
      %v376 = vunpack.c.l.b16 %v248
      %v377 = vpack.c.b16 %v362, %v361
      %v378 = vpack.c.b16 %v364, %v363
      %v379 = vpack.c.b16 %v366, %v365
      %v380 = vpack.c.b16 %v368, %v367
      %v381 = vpack.c.b16 %v370, %v369
      %v382 = vpack.c.b16 %v372, %v371
      %v383 = vpack.c.b16 %v374, %v373
      %v384 = vpack.c.b16 %v376, %v375
      %393 = vmatprep.subr.bf16.mxu0 0
      %394 = vmatpush1.bf16.msra.mxu0 %v384
      %395 = vmatprep.subr.bf16.mxu0 0
      %396 = vmatpush1.bf16.msra.mxu0 %v383
      %397 = vmatprep.subr.bf16.mxu0 0
      %398 = vmatpush1.bf16.msra.mxu0 %v382
      %399 = vmatprep.subr.bf16.mxu0 0
      %400 = vmatpush1.bf16.msra.mxu0 %v381
      %401 = vmatprep.subr.bf16.mxu0 0
      %402 = vmatpush1.bf16.msra.mxu0 %v380
      %403 = vmatprep.subr.bf16.mxu0 0
      %404 = vmatpush1.bf16.msra.mxu0 %v379
      %405 = vmatprep.subr.bf16.mxu0 0
      %406 = vmatpush1.bf16.msra.mxu0 %v378
      %407 = vmatprep.subr.bf16.mxu0 0
      %408 = vmatpush1.bf16.msra.mxu0 %v377
      %409 = vmatprep.subr.bf16.mxu0 0
      %410 = vmatpush2.bf16.msra.mxu0 0
      %411 = vmatprep.subr.bf16.mxu0 0
      %412 = vmatpush2.bf16.msra.mxu0 0
      %413 = vmatprep.subr.bf16.mxu0 0
      %414 = vmatpush2.bf16.msra.mxu0 0
      %415 = vmatprep.subr.bf16.mxu0 0
      %416 = vmatpush2.bf16.msra.mxu0 0
      %417 = vmatprep.subr.bf16.mxu0 0
      %418 = vmatpush2.bf16.msra.mxu0 0
      %419 = vmatprep.subr.bf16.mxu0 0
      %420 = vmatpush2.bf16.msra.mxu0 0
      %421 = vmatprep.subr.bf16.mxu0 0
      %422 = vmatpush2.bf16.msra.mxu0 0
      %423 = vmatprep.subr.bf16.mxu0 0
      %424 = vmatpush2.bf16.msra.mxu0 0
      %425 = vmatprep.mubr.bf16.mxu0 0
      %426 = vmatmul.mubr.bf16.gmra.mxu0 %v313
      %v427 = vpop.f32.mrf.mxu0
      %v428 = vadd.f32 0.0, %v427
      %v429 = vpop.f32.mrf.mxu0
      %v430 = vpop.f32.mrf.mxu0
      %v431 = vadd.f32 0.0, %v430
      %v432 = vpop.f32.mrf.mxu0
      %433 = vmatprep.mubr.bf16.mxu0 0
      %434 = vmatmul.mubr.bf16.gmra.mxu0 %v314
      %v435 = vpop.f32.mrf.mxu0
      %v436 = vadd.f32 0.0, %v435
      %v437 = vpop.f32.mrf.mxu0
      %v438 = vpop.f32.mrf.mxu0
      %v439 = vadd.f32 0.0, %v438
      %v440 = vpop.f32.mrf.mxu0
      %441 = vmatprep.mubr.bf16.mxu0 0
      %442 = vmatmul.mubr.bf16.gmra.mxu0 %v315
      %v443 = vpop.f32.mrf.mxu0
      %v444 = vadd.f32 0.0, %v443
      %v445 = vpop.f32.mrf.mxu0
      %v446 = vpop.f32.mrf.mxu0
      %v447 = vadd.f32 0.0, %v446
      %v448 = vpop.f32.mrf.mxu0
      %449 = vmatprep.mubr.bf16.mxu0 0
      %450 = vmatmul.mubr.bf16.gmra.mxu0 %v316
      %v451 = vpop.f32.mrf.mxu0
      %v452 = vadd.f32 0.0, %v451
      %v453 = vpop.f32.mrf.mxu0
      %v454 = vpop.f32.mrf.mxu0
      %v455 = vadd.f32 0.0, %v454
      %v456 = vpop.f32.mrf.mxu0
      %457 = vmatprep.mubr.bf16.mxu0 0
      %458 = vmatmul.mubr.bf16.gmra.mxu0 %v317
      %v459 = vpop.f32.mrf.mxu0
      %v460 = vadd.f32 0.0, %v459
      %v461 = vpop.f32.mrf.mxu0
      %v462 = vpop.f32.mrf.mxu0
      %v463 = vadd.f32 0.0, %v462
      %v464 = vpop.f32.mrf.mxu0
      %465 = vmatprep.mubr.bf16.mxu0 0
      %466 = vmatmul.mubr.bf16.gmra.mxu0 %v318
      %v467 = vpop.f32.mrf.mxu0
      %v468 = vadd.f32 0.0, %v467
      %v469 = vpop.f32.mrf.mxu0
      %v470 = vpop.f32.mrf.mxu0
      %v471 = vadd.f32 0.0, %v470
      %v472 = vpop.f32.mrf.mxu0
      %473 = vmatprep.mubr.bf16.mxu0 0
      %474 = vmatmul.mubr.bf16.gmra.mxu0 %v319
      %v475 = vpop.f32.mrf.mxu0
      %v476 = vadd.f32 0.0, %v475
      %v477 = vpop.f32.mrf.mxu0
      %v478 = vpop.f32.mrf.mxu0
      %v479 = vadd.f32 0.0, %v478
      %v480 = vpop.f32.mrf.mxu0
      %481 = vmatprep.mubr.bf16.mxu0 0
      %482 = vmatmul.mubr.bf16.gmra.mxu0 %v320
      %v483 = vpop.f32.mrf.mxu0
      %v484 = vadd.f32 0.0, %v483
      %v485 = vpop.f32.mrf.mxu0
      %v486 = vpop.f32.mrf.mxu0
      %v487 = vadd.f32 0.0, %v486
      %v488 = vpop.f32.mrf.mxu0
      %489 = vmatprep.mubr.bf16.mxu0 0
      %490 = vmatmul.mubr.bf16.gmra.mxu0 %v321
      %v491 = vpop.f32.mrf.mxu0
      %v492 = vadd.f32 0.0, %v491
      %v493 = vpop.f32.mrf.mxu0
      %v494 = vpop.f32.mrf.mxu0
      %v495 = vadd.f32 0.0, %v494
      %v496 = vpop.f32.mrf.mxu0
      %497 = vmatprep.mubr.bf16.mxu0 0
      %498 = vmatmul.mubr.bf16.gmra.mxu0 %v322
      %v499 = vpop.f32.mrf.mxu0
      %v500 = vadd.f32 0.0, %v499
      %v501 = vpop.f32.mrf.mxu0
      %v502 = vpop.f32.mrf.mxu0
      %v503 = vadd.f32 0.0, %v502
      %v504 = vpop.f32.mrf.mxu0
      %505 = vmatprep.mubr.bf16.mxu0 0
      %506 = vmatmul.mubr.bf16.gmra.mxu0 %v323
      %v507 = vpop.f32.mrf.mxu0
      %v508 = vadd.f32 0.0, %v507
      %v509 = vpop.f32.mrf.mxu0
      %v510 = vpop.f32.mrf.mxu0
      %v511 = vadd.f32 0.0, %v510
      %v512 = vpop.f32.mrf.mxu0
      %513 = vmatprep.mubr.bf16.mxu0 0
      %514 = vmatmul.mubr.bf16.gmra.mxu0 %v324
      %v515 = vpop.f32.mrf.mxu0
      %v516 = vadd.f32 0.0, %v515
      %v517 = vpop.f32.mrf.mxu0
      %v518 = vpop.f32.mrf.mxu0
      %v519 = vadd.f32 0.0, %v518
      %v520 = vpop.f32.mrf.mxu0
      %521 = vmatprep.mubr.bf16.mxu0 0
      %522 = vmatmul.mubr.bf16.gmra.mxu0 %v325
      %v523 = vpop.f32.mrf.mxu0
      %v524 = vadd.f32 0.0, %v523
      %v525 = vpop.f32.mrf.mxu0
      %v526 = vpop.f32.mrf.mxu0
      %v527 = vadd.f32 0.0, %v526
      %v528 = vpop.f32.mrf.mxu0
      %529 = vmatprep.mubr.bf16.mxu0 0
      %530 = vmatmul.mubr.bf16.gmra.mxu0 %v326
      %v531 = vpop.f32.mrf.mxu0
      %v532 = vadd.f32 0.0, %v531
      %v533 = vpop.f32.mrf.mxu0
      %v534 = vpop.f32.mrf.mxu0
      %v535 = vadd.f32 0.0, %v534
      %v536 = vpop.f32.mrf.mxu0
      %537 = vmatprep.mubr.bf16.mxu0 0
      %538 = vmatmul.mubr.bf16.gmra.mxu0 %v327
      %v539 = vpop.f32.mrf.mxu0
      %v540 = vadd.f32 0.0, %v539
      %v541 = vpop.f32.mrf.mxu0
      %v542 = vpop.f32.mrf.mxu0
      %v543 = vadd.f32 0.0, %v542
      %v544 = vpop.f32.mrf.mxu0
      %545 = vmatprep.mubr.bf16.mxu0 0
      %546 = vmatmul.mubr.bf16.gmra.mxu0 %v328
      %v547 = vpop.f32.mrf.mxu0
      %v548 = vadd.f32 0.0, %v547
      %v549 = vpop.f32.mrf.mxu0
      %v550 = vpop.f32.mrf.mxu0
      %v551 = vadd.f32 0.0, %v550
      %v552 = vpop.f32.mrf.mxu0
      %553 = vdwg.mxu0
      %v556 = vunpack.c.l.b16 %v183
      %v557 = vunpack.c.l.b16 %v184
      %v558 = vpack.c.b16 %v557, %v556
      %v576 = vunpack.c.l.b16 %v215
      %v577 = vunpack.c.l.b16 %v216
      %v578 = vunpack.c.l.b16 %v217
      %v579 = vunpack.c.l.b16 %v218
      %v580 = vunpack.c.l.b16 %v219
      %v581 = vunpack.c.l.b16 %v220
      %v582 = vunpack.c.l.b16 %v221
      %v583 = vunpack.c.l.b16 %v222
      %v584 = vunpack.c.l.b16 %v223
      %v585 = vunpack.c.l.b16 %v224
      %v586 = vunpack.c.l.b16 %v225
      %v587 = vunpack.c.l.b16 %v226
      %v588 = vunpack.c.l.b16 %v227
      %v589 = vunpack.c.l.b16 %v228
      %v590 = vunpack.c.l.b16 %v229
      %v591 = vunpack.c.l.b16 %v230
      %v592 = vpack.c.b16 %v577, %v576
      %v593 = vpack.c.b16 %v579, %v578
      %v594 = vpack.c.b16 %v581, %v580
      %v595 = vpack.c.b16 %v583, %v582
      %v596 = vpack.c.b16 %v585, %v584
      %v597 = vpack.c.b16 %v587, %v586
      %v598 = vpack.c.b16 %v589, %v588
      %v599 = vpack.c.b16 %v591, %v590
      %608 = vmatprep.subr.bf16.mxu0 0
      %609 = vmatpush1.bf16.msra.mxu0 %v599
      %610 = vmatprep.subr.bf16.mxu0 0
      %611 = vmatpush1.bf16.msra.mxu0 %v598
      %612 = vmatprep.subr.bf16.mxu0 0
      %613 = vmatpush1.bf16.msra.mxu0 %v597
      %614 = vmatprep.subr.bf16.mxu0 0
      %615 = vmatpush1.bf16.msra.mxu0 %v596
      %616 = vmatprep.subr.bf16.mxu0 0
      %617 = vmatpush1.bf16.msra.mxu0 %v595
      %618 = vmatprep.subr.bf16.mxu0 0
      %619 = vmatpush1.bf16.msra.mxu0 %v594
      %620 = vmatprep.subr.bf16.mxu0 0
      %621 = vmatpush1.bf16.msra.mxu0 %v593
      %622 = vmatprep.subr.bf16.mxu0 0
      %623 = vmatpush1.bf16.msra.mxu0 %v592
      %624 = vmatprep.subr.bf16.mxu0 0
      %625 = vmatpush2.bf16.msra.mxu0 0
      %626 = vmatprep.subr.bf16.mxu0 0
      %627 = vmatpush2.bf16.msra.mxu0 0
      %628 = vmatprep.subr.bf16.mxu0 0
      %629 = vmatpush2.bf16.msra.mxu0 0
      %630 = vmatprep.subr.bf16.mxu0 0
      %631 = vmatpush2.bf16.msra.mxu0 0
      %632 = vmatprep.subr.bf16.mxu0 0
      %633 = vmatpush2.bf16.msra.mxu0 0
      %634 = vmatprep.subr.bf16.mxu0 0
      %635 = vmatpush2.bf16.msra.mxu0 0
      %636 = vmatprep.subr.bf16.mxu0 0
      %637 = vmatpush2.bf16.msra.mxu0 0
      %638 = vmatprep.subr.bf16.mxu0 0
      %639 = vmatpush2.bf16.msra.mxu0 0
      %640 = vmatprep.mubr.bf16.mxu0 0
      %641 = vmatmul.mubr.bf16.gmra.mxu0 %v558
      %v642 = vpop.f32.mrf.mxu0
      %v643 = vadd.f32 %v428, %v642
      %v644 = vpop.f32.mrf.mxu0
      %v645 = vpop.f32.mrf.mxu0
      %v646 = vadd.f32 %v431, %v645
      %v647 = vpop.f32.mrf.mxu0
      %648 = vmatprep.mubr.bf16.mxu0 0
      %649 = vmatmul.mubr.bf16.gmra.mxu0 %v313
      %v650 = vpop.f32.mrf.mxu0
      %v651 = vadd.f32 %v436, %v650
      %v652 = vpop.f32.mrf.mxu0
      %v653 = vpop.f32.mrf.mxu0
      %v654 = vadd.f32 %v439, %v653
      %v655 = vpop.f32.mrf.mxu0
      %656 = vmatprep.mubr.bf16.mxu0 0
      %657 = vmatmul.mubr.bf16.gmra.mxu0 %v314
      %v658 = vpop.f32.mrf.mxu0
      %v659 = vadd.f32 %v444, %v658
      %v660 = vpop.f32.mrf.mxu0
      %v661 = vpop.f32.mrf.mxu0
      %v662 = vadd.f32 %v447, %v661
      %v663 = vpop.f32.mrf.mxu0
      %664 = vmatprep.mubr.bf16.mxu0 0
      %665 = vmatmul.mubr.bf16.gmra.mxu0 %v315
      %v666 = vpop.f32.mrf.mxu0
      %v667 = vadd.f32 %v452, %v666
      %v668 = vpop.f32.mrf.mxu0
      %v669 = vpop.f32.mrf.mxu0
      %v670 = vadd.f32 %v455, %v669
      %v671 = vpop.f32.mrf.mxu0
      %672 = vmatprep.mubr.bf16.mxu0 0
      %673 = vmatmul.mubr.bf16.gmra.mxu0 %v316
      %v674 = vpop.f32.mrf.mxu0
      %v675 = vadd.f32 %v460, %v674
      %v676 = vpop.f32.mrf.mxu0
      %v677 = vpop.f32.mrf.mxu0
      %v678 = vadd.f32 %v463, %v677
      %v679 = vpop.f32.mrf.mxu0
      %680 = vmatprep.mubr.bf16.mxu0 0
      %681 = vmatmul.mubr.bf16.gmra.mxu0 %v317
      %v682 = vpop.f32.mrf.mxu0
      %v683 = vadd.f32 %v468, %v682
      %v684 = vpop.f32.mrf.mxu0
      %v685 = vpop.f32.mrf.mxu0
      %v686 = vadd.f32 %v471, %v685
      %v687 = vpop.f32.mrf.mxu0
      %688 = vmatprep.mubr.bf16.mxu0 0
      %689 = vmatmul.mubr.bf16.gmra.mxu0 %v318
      %v690 = vpop.f32.mrf.mxu0
      %v691 = vadd.f32 %v476, %v690
      %v692 = vpop.f32.mrf.mxu0
      %v693 = vpop.f32.mrf.mxu0
      %v694 = vadd.f32 %v479, %v693
      %v695 = vpop.f32.mrf.mxu0
      %696 = vmatprep.mubr.bf16.mxu0 0
      %697 = vmatmul.mubr.bf16.gmra.mxu0 %v319
      %v698 = vpop.f32.mrf.mxu0
      %v699 = vadd.f32 %v484, %v698
      %v700 = vpop.f32.mrf.mxu0
      %v701 = vpop.f32.mrf.mxu0
      %v702 = vadd.f32 %v487, %v701
      %v703 = vpop.f32.mrf.mxu0
      %704 = vmatprep.mubr.bf16.mxu0 0
      %705 = vmatmul.mubr.bf16.gmra.mxu0 %v320
      %v706 = vpop.f32.mrf.mxu0
      %v707 = vadd.f32 %v492, %v706
      %v708 = vpop.f32.mrf.mxu0
      %v709 = vpop.f32.mrf.mxu0
      %v710 = vadd.f32 %v495, %v709
      %v711 = vpop.f32.mrf.mxu0
      %712 = vmatprep.mubr.bf16.mxu0 0
      %713 = vmatmul.mubr.bf16.gmra.mxu0 %v321
      %v714 = vpop.f32.mrf.mxu0
      %v715 = vadd.f32 %v500, %v714
      %v716 = vpop.f32.mrf.mxu0
      %v717 = vpop.f32.mrf.mxu0
      %v718 = vadd.f32 %v503, %v717
      %v719 = vpop.f32.mrf.mxu0
      %720 = vmatprep.mubr.bf16.mxu0 0
      %721 = vmatmul.mubr.bf16.gmra.mxu0 %v322
      %v722 = vpop.f32.mrf.mxu0
      %v723 = vadd.f32 %v508, %v722
      %v724 = vpop.f32.mrf.mxu0
      %v725 = vpop.f32.mrf.mxu0
      %v726 = vadd.f32 %v511, %v725
      %v727 = vpop.f32.mrf.mxu0
      %728 = vmatprep.mubr.bf16.mxu0 0
      %729 = vmatmul.mubr.bf16.gmra.mxu0 %v323
      %v730 = vpop.f32.mrf.mxu0
      %v731 = vadd.f32 %v516, %v730
      %v732 = vpop.f32.mrf.mxu0
      %v733 = vpop.f32.mrf.mxu0
      %v734 = vadd.f32 %v519, %v733
      %v735 = vpop.f32.mrf.mxu0
      %736 = vmatprep.mubr.bf16.mxu0 0
      %737 = vmatmul.mubr.bf16.gmra.mxu0 %v324
      %v738 = vpop.f32.mrf.mxu0
      %v739 = vadd.f32 %v524, %v738
      %v740 = vpop.f32.mrf.mxu0
      %v741 = vpop.f32.mrf.mxu0
      %v742 = vadd.f32 %v527, %v741
      %v743 = vpop.f32.mrf.mxu0
      %744 = vmatprep.mubr.bf16.mxu0 0
      %745 = vmatmul.mubr.bf16.gmra.mxu0 %v325
      %v746 = vpop.f32.mrf.mxu0
      %v747 = vadd.f32 %v532, %v746
      %v748 = vpop.f32.mrf.mxu0
      %v749 = vpop.f32.mrf.mxu0
      %v750 = vadd.f32 %v535, %v749
      %v751 = vpop.f32.mrf.mxu0
      %752 = vmatprep.mubr.bf16.mxu0 0
      %753 = vmatmul.mubr.bf16.gmra.mxu0 %v326
      %v754 = vpop.f32.mrf.mxu0
      %v755 = vadd.f32 %v540, %v754
      %v756 = vpop.f32.mrf.mxu0
      %v757 = vpop.f32.mrf.mxu0
      %v758 = vadd.f32 %v543, %v757
      %v759 = vpop.f32.mrf.mxu0
      %760 = vmatprep.mubr.bf16.mxu0 0
      %761 = vmatmul.mubr.bf16.gmra.mxu0 %v327
      %v762 = vpop.f32.mrf.mxu0
      %v763 = vadd.f32 %v548, %v762
      %v764 = vpop.f32.mrf.mxu0
      %v765 = vpop.f32.mrf.mxu0
      %v766 = vadd.f32 %v551, %v765
      %v767 = vpop.f32.mrf.mxu0
      %768 = vdwg.mxu0
      %v769 = vld [vmem:[%s172 + $0x10] sm:$0xf]
      %v770 = vld [vmem:[%s172 + $0x14] sm:$0xf]
      %v771 = vld [vmem:[%s172 + $0x18] sm:$0xf]
      %v772 = vld [vmem:[%s172 + $0x1c] sm:$0xf]
      %v773 = vld [vmem:[%s172 + $0x20] sm:$0xf]
      %v774 = vld [vmem:[%s172 + $0x24] sm:$0xf]
      %v775 = vld [vmem:[%s172 + $0x28] sm:$0xf]
      %v776 = vld [vmem:[%s172 + $0x2c] sm:$0xf]
      %v777 = vld [vmem:[%s172 + $0x30] sm:$0xf]
      %v778 = vld [vmem:[%s172 + $0x34] sm:$0xf]
      %v779 = vld [vmem:[%s172 + $0x38] sm:$0xf]
      %v780 = vld [vmem:[%s172 + $0x3c] sm:$0xf]
      %v781 = vld [vmem:[%s172 + $0x40] sm:$0xf]
      %v782 = vld [vmem:[%s172 + $0x44] sm:$0xf]
      %v783 = vld [vmem:[%s172 + $0x48] sm:$0xf]
      %v784 = vld [vmem:[%s172 + $0x4c] sm:$0xf]
      %v785 = vld [vmem:[%s172 + $0x50] sm:$0xf]
      %v786 = vld [vmem:[%s172 + $0x54] sm:$0xf]
      %v787 = vld [vmem:[%s172 + $0x58] sm:$0xf]
      %v788 = vld [vmem:[%s172 + $0x5c] sm:$0xf]
      %v789 = vld [vmem:[%s172 + $0x60] sm:$0xf]
      %v790 = vld [vmem:[%s172 + $0x64] sm:$0xf]
      %v791 = vld [vmem:[%s172 + $0x68] sm:$0xf]
      %v792 = vld [vmem:[%s172 + $0x6c] sm:$0xf]
      %v793 = vld [vmem:[%s172 + $0x70] sm:$0xf]
      %v794 = vld [vmem:[%s172 + $0x74] sm:$0xf]
      %v795 = vld [vmem:[%s172 + $0x78] sm:$0xf]
      %v796 = vld [vmem:[%s172 + $0x7c] sm:$0xf]
      %v797 = vld [vmem:[%s172 + $0x80] sm:$0xf]
      %v798 = vld [vmem:[%s172 + $0x84] sm:$0xf]
      %v799 = vld [vmem:[%s172 + $0x88] sm:$0xf]
      %v800 = vld [vmem:[%s172 + $0x8c] sm:$0xf]
      %v801 = vld [vmem:[%s1 + $0x80] sm:$0xf]
      %v802 = vld [vmem:[%s1 + $0x84] sm:$0xf]
      %v803 = vld [vmem:[%s1 + $0x88] sm:$0xf]
      %v804 = vld [vmem:[%s1 + $0x8c] sm:$0xf]
      %v805 = vld [vmem:[%s1 + $0x90] sm:$0xf]
      %v806 = vld [vmem:[%s1 + $0x94] sm:$0xf]
      %v807 = vld [vmem:[%s1 + $0x98] sm:$0xf]
      %v808 = vld [vmem:[%s1 + $0x9c] sm:$0xf]
      %v809 = vld [vmem:[%s1 + $0xa0] sm:$0xf]
      %v810 = vld [vmem:[%s1 + $0xa4] sm:$0xf]
      %v811 = vld [vmem:[%s1 + $0xa8] sm:$0xf]
      %v812 = vld [vmem:[%s1 + $0xac] sm:$0xf]
      %v813 = vld [vmem:[%s1 + $0xb0] sm:$0xf]
      %v814 = vld [vmem:[%s1 + $0xb4] sm:$0xf]
      %v815 = vld [vmem:[%s1 + $0xb8] sm:$0xf]
      %v816 = vld [vmem:[%s1 + $0xbc] sm:$0xf]
      %v849 = vunpack.c.l.b16 %v769
      %v850 = vunpack.c.l.b16 %v770
      %v851 = vunpack.c.l.b16 %v771
      %v852 = vunpack.c.l.b16 %v772
      %v853 = vunpack.c.l.b16 %v773
      %v854 = vunpack.c.l.b16 %v774
      %v855 = vunpack.c.l.b16 %v775
      %v856 = vunpack.c.l.b16 %v776
      %v857 = vunpack.c.l.b16 %v777
      %v858 = vunpack.c.l.b16 %v778
      %v859 = vunpack.c.l.b16 %v779
      %v860 = vunpack.c.l.b16 %v780
      %v861 = vunpack.c.l.b16 %v781
      %v862 = vunpack.c.l.b16 %v782
      %v863 = vunpack.c.l.b16 %v783
      %v864 = vunpack.c.l.b16 %v784
      %v865 = vunpack.c.l.b16 %v785
      %v866 = vunpack.c.l.b16 %v786
      %v867 = vunpack.c.l.b16 %v787
      %v868 = vunpack.c.l.b16 %v788
      %v869 = vunpack.c.l.b16 %v789
      %v870 = vunpack.c.l.b16 %v790
      %v871 = vunpack.c.l.b16 %v791
      %v872 = vunpack.c.l.b16 %v792
      %v873 = vunpack.c.l.b16 %v793
      %v874 = vunpack.c.l.b16 %v794
      %v875 = vunpack.c.l.b16 %v795
      %v876 = vunpack.c.l.b16 %v796
      %v877 = vunpack.c.l.b16 %v797
      %v878 = vunpack.c.l.b16 %v798
      %v879 = vunpack.c.l.b16 %v799
      %v880 = vunpack.c.l.b16 %v800
      %v881 = vpack.c.b16 %v850, %v849
      %v882 = vpack.c.b16 %v852, %v851
      %v883 = vpack.c.b16 %v854, %v853
      %v884 = vpack.c.b16 %v856, %v855
      %v885 = vpack.c.b16 %v858, %v857
      %v886 = vpack.c.b16 %v860, %v859
      %v887 = vpack.c.b16 %v862, %v861
      %v888 = vpack.c.b16 %v864, %v863
      %v889 = vpack.c.b16 %v866, %v865
      %v890 = vpack.c.b16 %v868, %v867
      %v891 = vpack.c.b16 %v870, %v869
      %v892 = vpack.c.b16 %v872, %v871
      %v893 = vpack.c.b16 %v874, %v873
      %v894 = vpack.c.b16 %v876, %v875
      %v895 = vpack.c.b16 %v878, %v877
      %v896 = vpack.c.b16 %v880, %v879
      %v929 = vunpack.c.l.b16 %v801
      %v930 = vunpack.c.l.b16 %v802
      %v931 = vunpack.c.l.b16 %v803
      %v932 = vunpack.c.l.b16 %v804
      %v933 = vunpack.c.l.b16 %v805
      %v934 = vunpack.c.l.b16 %v806
      %v935 = vunpack.c.l.b16 %v807
      %v936 = vunpack.c.l.b16 %v808
      %v937 = vunpack.c.l.b16 %v809
      %v938 = vunpack.c.l.b16 %v810
      %v939 = vunpack.c.l.b16 %v811
      %v940 = vunpack.c.l.b16 %v812
      %v941 = vunpack.c.l.b16 %v813
      %v942 = vunpack.c.l.b16 %v814
      %v943 = vunpack.c.l.b16 %v815
      %v944 = vunpack.c.l.b16 %v816
      %v945 = vpack.c.b16 %v930, %v929
      %v946 = vpack.c.b16 %v932, %v931
      %v947 = vpack.c.b16 %v934, %v933
      %v948 = vpack.c.b16 %v936, %v935
      %v949 = vpack.c.b16 %v938, %v937
      %v950 = vpack.c.b16 %v940, %v939
      %v951 = vpack.c.b16 %v942, %v941
      %v952 = vpack.c.b16 %v944, %v943
      %961 = vmatprep.subr.bf16.mxu0 0
      %962 = vmatpush1.bf16.msra.mxu0 %v952
      %963 = vmatprep.subr.bf16.mxu0 0
      %964 = vmatpush1.bf16.msra.mxu0 %v951
      %965 = vmatprep.subr.bf16.mxu0 0
      %966 = vmatpush1.bf16.msra.mxu0 %v950
      %967 = vmatprep.subr.bf16.mxu0 0
      %968 = vmatpush1.bf16.msra.mxu0 %v949
      %969 = vmatprep.subr.bf16.mxu0 0
      %970 = vmatpush1.bf16.msra.mxu0 %v948
      %971 = vmatprep.subr.bf16.mxu0 0
      %972 = vmatpush1.bf16.msra.mxu0 %v947
      %973 = vmatprep.subr.bf16.mxu0 0
      %974 = vmatpush1.bf16.msra.mxu0 %v946
      %975 = vmatprep.subr.bf16.mxu0 0
      %976 = vmatpush1.bf16.msra.mxu0 %v945
      %977 = vmatprep.subr.bf16.mxu0 0
      %978 = vmatpush2.bf16.msra.mxu0 0
      %979 = vmatprep.subr.bf16.mxu0 0
      %980 = vmatpush2.bf16.msra.mxu0 0
      %981 = vmatprep.subr.bf16.mxu0 0
      %982 = vmatpush2.bf16.msra.mxu0 0
      %983 = vmatprep.subr.bf16.mxu0 0
      %984 = vmatpush2.bf16.msra.mxu0 0
      %985 = vmatprep.subr.bf16.mxu0 0
      %986 = vmatpush2.bf16.msra.mxu0 0
      %987 = vmatprep.subr.bf16.mxu0 0
      %988 = vmatpush2.bf16.msra.mxu0 0
      %989 = vmatprep.subr.bf16.mxu0 0
      %990 = vmatpush2.bf16.msra.mxu0 0
      %991 = vmatprep.subr.bf16.mxu0 0
      %992 = vmatpush2.bf16.msra.mxu0 0
      %993 = vmatprep.mubr.bf16.mxu0 0
      %994 = vmatmul.mubr.bf16.gmra.mxu0 %v881
      %v995 = vpop.f32.mrf.mxu0
      %v996 = vadd.f32 0.0, %v995
      %v997 = vpop.f32.mrf.mxu0
      %v998 = vpop.f32.mrf.mxu0
      %v999 = vadd.f32 0.0, %v998
      %v1000 = vpop.f32.mrf.mxu0
      %1001 = vmatprep.mubr.bf16.mxu0 0
      %1002 = vmatmul.mubr.bf16.gmra.mxu0 %v882
      %v1003 = vpop.f32.mrf.mxu0
      %v1004 = vadd.f32 0.0, %v1003
      %v1005 = vpop.f32.mrf.mxu0
      %v1006 = vpop.f32.mrf.mxu0
      %v1007 = vadd.f32 0.0, %v1006
      %v1008 = vpop.f32.mrf.mxu0
      %1009 = vmatprep.mubr.bf16.mxu0 0
      %1010 = vmatmul.mubr.bf16.gmra.mxu0 %v883
      %v1011 = vpop.f32.mrf.mxu0
      %v1012 = vadd.f32 0.0, %v1011
      %v1013 = vpop.f32.mrf.mxu0
      %v1014 = vpop.f32.mrf.mxu0
      %v1015 = vadd.f32 0.0, %v1014
      %v1016 = vpop.f32.mrf.mxu0
      %1017 = vmatprep.mubr.bf16.mxu0 0
      %1018 = vmatmul.mubr.bf16.gmra.mxu0 %v884
      %v1019 = vpop.f32.mrf.mxu0
      %v1020 = vadd.f32 0.0, %v1019
      %v1021 = vpop.f32.mrf.mxu0
      %v1022 = vpop.f32.mrf.mxu0
      %v1023 = vadd.f32 0.0, %v1022
      %v1024 = vpop.f32.mrf.mxu0
      %1025 = vmatprep.mubr.bf16.mxu0 0
      %1026 = vmatmul.mubr.bf16.gmra.mxu0 %v885
      %v1027 = vpop.f32.mrf.mxu0
      %v1028 = vadd.f32 0.0, %v1027
      %v1029 = vpop.f32.mrf.mxu0
      %v1030 = vpop.f32.mrf.mxu0
      %v1031 = vadd.f32 0.0, %v1030
      %v1032 = vpop.f32.mrf.mxu0
      %1033 = vmatprep.mubr.bf16.mxu0 0
      %1034 = vmatmul.mubr.bf16.gmra.mxu0 %v886
      %v1035 = vpop.f32.mrf.mxu0
      %v1036 = vadd.f32 0.0, %v1035
      %v1037 = vpop.f32.mrf.mxu0
      %v1038 = vpop.f32.mrf.mxu0
      %v1039 = vadd.f32 0.0, %v1038
      %v1040 = vpop.f32.mrf.mxu0
      %1041 = vmatprep.mubr.bf16.mxu0 0
      %1042 = vmatmul.mubr.bf16.gmra.mxu0 %v887
      %v1043 = vpop.f32.mrf.mxu0
      %v1044 = vadd.f32 0.0, %v1043
      %v1045 = vpop.f32.mrf.mxu0
      %v1046 = vpop.f32.mrf.mxu0
      %v1047 = vadd.f32 0.0, %v1046
      %v1048 = vpop.f32.mrf.mxu0
      %1049 = vmatprep.mubr.bf16.mxu0 0
      %1050 = vmatmul.mubr.bf16.gmra.mxu0 %v888
      %v1051 = vpop.f32.mrf.mxu0
      %v1052 = vadd.f32 0.0, %v1051
      %v1053 = vpop.f32.mrf.mxu0
      %v1054 = vpop.f32.mrf.mxu0
      %v1055 = vadd.f32 0.0, %v1054
      %v1056 = vpop.f32.mrf.mxu0
      %1057 = vmatprep.mubr.bf16.mxu0 0
      %1058 = vmatmul.mubr.bf16.gmra.mxu0 %v889
      %v1059 = vpop.f32.mrf.mxu0
      %v1060 = vadd.f32 0.0, %v1059
      %v1061 = vpop.f32.mrf.mxu0
      %v1062 = vpop.f32.mrf.mxu0
      %v1063 = vadd.f32 0.0, %v1062
      %v1064 = vpop.f32.mrf.mxu0
      %1065 = vmatprep.mubr.bf16.mxu0 0
      %1066 = vmatmul.mubr.bf16.gmra.mxu0 %v890
      %v1067 = vpop.f32.mrf.mxu0
      %v1068 = vadd.f32 0.0, %v1067
      %v1069 = vpop.f32.mrf.mxu0
      %v1070 = vpop.f32.mrf.mxu0
      %v1071 = vadd.f32 0.0, %v1070
      %v1072 = vpop.f32.mrf.mxu0
      %1073 = vmatprep.mubr.bf16.mxu0 0
      %1074 = vmatmul.mubr.bf16.gmra.mxu0 %v891
      %v1075 = vpop.f32.mrf.mxu0
      %v1076 = vadd.f32 0.0, %v1075
      %v1077 = vpop.f32.mrf.mxu0
      %v1078 = vpop.f32.mrf.mxu0
      %v1079 = vadd.f32 0.0, %v1078
      %v1080 = vpop.f32.mrf.mxu0
      %1081 = vmatprep.mubr.bf16.mxu0 0
      %1082 = vmatmul.mubr.bf16.gmra.mxu0 %v892
      %v1083 = vpop.f32.mrf.mxu0
      %v1084 = vadd.f32 0.0, %v1083
      %v1085 = vpop.f32.mrf.mxu0
      %v1086 = vpop.f32.mrf.mxu0
      %v1087 = vadd.f32 0.0, %v1086
      %v1088 = vpop.f32.mrf.mxu0
      %1089 = vmatprep.mubr.bf16.mxu0 0
      %1090 = vmatmul.mubr.bf16.gmra.mxu0 %v893
      %v1091 = vpop.f32.mrf.mxu0
      %v1092 = vadd.f32 0.0, %v1091
      %v1093 = vpop.f32.mrf.mxu0
      %v1094 = vpop.f32.mrf.mxu0
      %v1095 = vadd.f32 0.0, %v1094
      %v1096 = vpop.f32.mrf.mxu0
      %1097 = vmatprep.mubr.bf16.mxu0 0
      %1098 = vmatmul.mubr.bf16.gmra.mxu0 %v894
      %v1099 = vpop.f32.mrf.mxu0
      %v1100 = vadd.f32 0.0, %v1099
      %v1101 = vpop.f32.mrf.mxu0
      %v1102 = vpop.f32.mrf.mxu0
      %v1103 = vadd.f32 0.0, %v1102
      %v1104 = vpop.f32.mrf.mxu0
      %1105 = vmatprep.mubr.bf16.mxu0 0
      %1106 = vmatmul.mubr.bf16.gmra.mxu0 %v895
      %v1107 = vpop.f32.mrf.mxu0
      %v1108 = vadd.f32 0.0, %v1107
      %v1109 = vpop.f32.mrf.mxu0
      %v1110 = vpop.f32.mrf.mxu0
      %v1111 = vadd.f32 0.0, %v1110
      %v1112 = vpop.f32.mrf.mxu0
      %1113 = vmatprep.mubr.bf16.mxu0 0
      %1114 = vmatmul.mubr.bf16.gmra.mxu0 %v896
      %v1115 = vpop.f32.mrf.mxu0
      %v1116 = vadd.f32 0.0, %v1115
      %v1117 = vpop.f32.mrf.mxu0
      %v1118 = vpop.f32.mrf.mxu0
      %v1119 = vadd.f32 0.0, %v1118
      %v1120 = vpop.f32.mrf.mxu0
      %1121 = vdwg.mxu0
      %v1122 = vadd.f32 %v643, %v996
      %v1123 = vadd.f32 %v646, %v999
      %v1124 = vadd.f32 %v651, %v1004
      %v1125 = vadd.f32 %v654, %v1007
      %v1126 = vadd.f32 %v659, %v1012
      %v1127 = vadd.f32 %v662, %v1015
      %v1128 = vadd.f32 %v667, %v1020
      %v1129 = vadd.f32 %v670, %v1023
      %v1130 = vadd.f32 %v675, %v1028
      %v1131 = vadd.f32 %v678, %v1031
      %v1132 = vadd.f32 %v683, %v1036
      %v1133 = vadd.f32 %v686, %v1039
      %v1134 = vadd.f32 %v691, %v1044
      %v1135 = vadd.f32 %v694, %v1047
      %v1136 = vadd.f32 %v699, %v1052
      %v1137 = vadd.f32 %v702, %v1055
      %v1138 = vadd.f32 %v707, %v1060
      %v1139 = vadd.f32 %v710, %v1063
      %v1140 = vadd.f32 %v715, %v1068
      %v1141 = vadd.f32 %v718, %v1071
      %v1142 = vadd.f32 %v723, %v1076
      %v1143 = vadd.f32 %v726, %v1079
      %v1144 = vadd.f32 %v731, %v1084
      %v1145 = vadd.f32 %v734, %v1087
      %v1146 = vadd.f32 %v739, %v1092
      %v1147 = vadd.f32 %v742, %v1095
      %v1148 = vadd.f32 %v747, %v1100
      %v1149 = vadd.f32 %v750, %v1103
      %v1150 = vadd.f32 %v755, %v1108
      %v1151 = vadd.f32 %v758, %v1111
      %v1152 = vadd.f32 %v763, %v1116
      %v1153 = vadd.f32 %v766, %v1119
      %v1154 = vpack.c.bf16 %v1123, %v1122
      %v1155 = vpack.c.bf16 %v1125, %v1124
      %v1156 = vpack.c.bf16 %v1127, %v1126
      %v1157 = vpack.c.bf16 %v1129, %v1128
      %v1158 = vpack.c.bf16 %v1131, %v1130
      %v1159 = vpack.c.bf16 %v1133, %v1132
      %v1160 = vpack.c.bf16 %v1135, %v1134
      %v1161 = vpack.c.bf16 %v1137, %v1136
      %v1162 = vpack.c.bf16 %v1139, %v1138
      %v1163 = vpack.c.bf16 %v1141, %v1140
      %v1164 = vpack.c.bf16 %v1143, %v1142
      %v1165 = vpack.c.bf16 %v1145, %v1144
      %v1166 = vpack.c.bf16 %v1147, %v1146
      %v1167 = vpack.c.bf16 %v1149, %v1148
      %v1168 = vpack.c.bf16 %v1151, %v1150
      %v1169 = vpack.c.bf16 %v1153, %v1152
      %v1186 = vunpack.c.l.b16 %v1154
      %v1187 = vunpack.c.h.b16 %v1154
      %v1188 = vunpack.c.l.b16 %v1155
      %v1189 = vunpack.c.h.b16 %v1155
      %v1190 = vunpack.c.l.b16 %v1156
      %v1191 = vunpack.c.h.b16 %v1156
      %v1192 = vunpack.c.l.b16 %v1157
      %v1193 = vunpack.c.h.b16 %v1157
      %v1194 = vunpack.c.l.b16 %v1158
      %v1195 = vunpack.c.h.b16 %v1158
      %v1196 = vunpack.c.l.b16 %v1159
      %v1197 = vunpack.c.h.b16 %v1159
      %v1198 = vunpack.c.l.b16 %v1160
      %v1199 = vunpack.c.h.b16 %v1160
      %v1200 = vunpack.c.l.b16 %v1161
      %v1201 = vunpack.c.h.b16 %v1161
      %v1202 = vunpack.c.l.b16 %v1162
      %v1203 = vunpack.c.h.b16 %v1162
      %v1204 = vunpack.c.l.b16 %v1163
      %v1205 = vunpack.c.h.b16 %v1163
      %v1206 = vunpack.c.l.b16 %v1164
      %v1207 = vunpack.c.h.b16 %v1164
      %v1208 = vunpack.c.l.b16 %v1165
      %v1209 = vunpack.c.h.b16 %v1165
      %v1210 = vunpack.c.l.b16 %v1166
      %v1211 = vunpack.c.h.b16 %v1166
      %v1212 = vunpack.c.l.b16 %v1167
      %v1213 = vunpack.c.h.b16 %v1167
      %v1214 = vunpack.c.l.b16 %v1168
      %v1215 = vunpack.c.h.b16 %v1168
      %v1216 = vunpack.c.l.b16 %v1169
      %v1217 = vunpack.c.h.b16 %v1169
      %v1218 = vpack.c.b16 %v1186, %v1186
      %v1219 = vpack.c.b16 %v1187, %v1187
      %v1220 = vpack.c.b16 %v1188, %v1188
      %v1221 = vpack.c.b16 %v1189, %v1189
      %v1222 = vpack.c.b16 %v1190, %v1190
      %v1223 = vpack.c.b16 %v1191, %v1191
      %v1224 = vpack.c.b16 %v1192, %v1192
      %v1225 = vpack.c.b16 %v1193, %v1193
      %v1226 = vpack.c.b16 %v1194, %v1194
      %v1227 = vpack.c.b16 %v1195, %v1195
      %v1228 = vpack.c.b16 %v1196, %v1196
      %v1229 = vpack.c.b16 %v1197, %v1197
      %v1230 = vpack.c.b16 %v1198, %v1198
      %v1231 = vpack.c.b16 %v1199, %v1199
      %v1232 = vpack.c.b16 %v1200, %v1200
      %v1233 = vpack.c.b16 %v1201, %v1201
      %v1234 = vpack.c.b16 %v1202, %v1202
      %v1235 = vpack.c.b16 %v1203, %v1203
      %v1236 = vpack.c.b16 %v1204, %v1204
      %v1237 = vpack.c.b16 %v1205, %v1205
      %v1238 = vpack.c.b16 %v1206, %v1206
      %v1239 = vpack.c.b16 %v1207, %v1207
      %v1240 = vpack.c.b16 %v1208, %v1208
      %v1241 = vpack.c.b16 %v1209, %v1209
      %v1242 = vpack.c.b16 %v1210, %v1210
      %v1243 = vpack.c.b16 %v1211, %v1211
      %v1244 = vpack.c.b16 %v1212, %v1212
      %v1245 = vpack.c.b16 %v1213, %v1213
      %v1246 = vpack.c.b16 %v1214, %v1214
      %v1247 = vpack.c.b16 %v1215, %v1215
      %v1248 = vpack.c.b16 %v1216, %v1216
      %v1249 = vpack.c.b16 %v1217, %v1217
      %1282 = vst [vmem:[%s177] sm:$0xf] %v1218
      %1283 = vst [vmem:[%s177 + $0x4] sm:$0xf] %v1219
      %1284 = vst [vmem:[%s177 + $0x8] sm:$0xf] %v1220
      %1285 = vst [vmem:[%s177 + $0xc] sm:$0xf] %v1221
      %1286 = vst [vmem:[%s177 + $0x10] sm:$0xf] %v1222
      %1287 = vst [vmem:[%s177 + $0x14] sm:$0xf] %v1223
      %1288 = vst [vmem:[%s177 + $0x18] sm:$0xf] %v1224
      %1289 = vst [vmem:[%s177 + $0x1c] sm:$0xf] %v1225
      %1290 = vst [vmem:[%s177 + $0x20] sm:$0xf] %v1226
      %1291 = vst [vmem:[%s177 + $0x24] sm:$0xf] %v1227
      %1292 = vst [vmem:[%s177 + $0x28] sm:$0xf] %v1228
      %1293 = vst [vmem:[%s177 + $0x2c] sm:$0xf] %v1229
      %1294 = vst [vmem:[%s177 + $0x30] sm:$0xf] %v1230
      %1295 = vst [vmem:[%s177 + $0x34] sm:$0xf] %v1231
      %1296 = vst [vmem:[%s177 + $0x38] sm:$0xf] %v1232
      %1297 = vst [vmem:[%s177 + $0x3c] sm:$0xf] %v1233
      %1298 = vst [vmem:[%s177 + $0x40] sm:$0xf] %v1234
      %1299 = vst [vmem:[%s177 + $0x44] sm:$0xf] %v1235
      %1300 = vst [vmem:[%s177 + $0x48] sm:$0xf] %v1236
      %1301 = vst [vmem:[%s177 + $0x4c] sm:$0xf] %v1237
      %1302 = vst [vmem:[%s177 + $0x50] sm:$0xf] %v1238
      %1303 = vst [vmem:[%s177 + $0x54] sm:$0xf] %v1239
      %1304 = vst [vmem:[%s177 + $0x58] sm:$0xf] %v1240
      %1305 = vst [vmem:[%s177 + $0x5c] sm:$0xf] %v1241
      %1306 = vst [vmem:[%s177 + $0x60] sm:$0xf] %v1242
      %1307 = vst [vmem:[%s177 + $0x64] sm:$0xf] %v1243
      %1308 = vst [vmem:[%s177 + $0x68] sm:$0xf] %v1244
      %1309 = vst [vmem:[%s177 + $0x6c] sm:$0xf] %v1245
      %1310 = vst [vmem:[%s177 + $0x70] sm:$0xf] %v1246
      %1311 = vst [vmem:[%s177 + $0x74] sm:$0xf] %v1247
      %1312 = vst [vmem:[%s177 + $0x78] sm:$0xf] %v1248
      %1313 = vst [vmem:[%s177 + $0x7c] sm:$0xf] %v1249
      %v1314 = vadd.f32 %v1122, %v1123
      %v1315 = vadd.f32 %v1314, %v1124
      %v1316 = vadd.f32 %v1315, %v1125
      %v1317 = vadd.f32 %v1316, %v1126
      %v1318 = vadd.f32 %v1317, %v1127
      %v1319 = vadd.f32 %v1318, %v1128
      %v1320 = vadd.f32 %v1319, %v1129
      %v1321 = vadd.f32 %v1320, %v1130
      %v1322 = vadd.f32 %v1321, %v1131
      %v1323 = vadd.f32 %v1322, %v1132
      %v1324 = vadd.f32 %v1323, %v1133
      %v1325 = vadd.f32 %v1324, %v1134
      %v1326 = vadd.f32 %v1325, %v1135
      %v1327 = vadd.f32 %v1326, %v1136
      %v1328 = vadd.f32 %v1327, %v1137
      %v1329 = vadd.f32 %v1328, %v1138
      %v1330 = vadd.f32 %v1329, %v1139
      %v1331 = vadd.f32 %v1330, %v1140
      %v1332 = vadd.f32 %v1331, %v1141
      %v1333 = vadd.f32 %v1332, %v1142
      %v1334 = vadd.f32 %v1333, %v1143
      %v1335 = vadd.f32 %v1334, %v1144
      %v1336 = vadd.f32 %v1335, %v1145
      %v1337 = vadd.f32 %v1336, %v1146
      %v1338 = vadd.f32 %v1337, %v1147
      %v1339 = vadd.f32 %v1338, %v1148
      %v1340 = vadd.f32 %v1339, %v1149
      %v1341 = vadd.f32 %v1340, %v1150
      %v1342 = vadd.f32 %v1341, %v1151
      %v1343 = vadd.f32 %v1342, %v1152
      %v1344 = vadd.f32 %v1343, %v1153
      %v1345 = vrot.slane %v1344, 4
      %v1346 = vadd.f32 %v1344, %v1345
      %v1347 = vrot.slane %v1346, 2
      %v1348 = vadd.f32 %v1346, %v1347
      %v1349 = vrot.slane %v1348, 1
      %v1350 = vadd.f32 %v1348, %v1349
      %v1351 = vmul.f32 %v1122, %v1122
      %v1352 = vmul.f32 %v1123, %v1123
      %v1353 = vmul.f32 %v1124, %v1124
      %v1354 = vmul.f32 %v1125, %v1125
      %v1355 = vmul.f32 %v1126, %v1126
      %v1356 = vmul.f32 %v1127, %v1127
      %v1357 = vmul.f32 %v1128, %v1128
      %v1358 = vmul.f32 %v1129, %v1129
      %v1359 = vmul.f32 %v1130, %v1130
      %v1360 = vmul.f32 %v1131, %v1131
      %v1361 = vmul.f32 %v1132, %v1132
      %v1362 = vmul.f32 %v1133, %v1133
      %v1363 = vmul.f32 %v1134, %v1134
      %v1364 = vmul.f32 %v1135, %v1135
      %v1365 = vmul.f32 %v1136, %v1136
      %v1366 = vmul.f32 %v1137, %v1137
      %v1367 = vmul.f32 %v1138, %v1138
      %v1368 = vmul.f32 %v1139, %v1139
      %v1369 = vmul.f32 %v1140, %v1140
      %v1370 = vmul.f32 %v1141, %v1141
      %v1371 = vmul.f32 %v1142, %v1142
      %v1372 = vmul.f32 %v1143, %v1143
      %v1373 = vmul.f32 %v1144, %v1144
      %v1374 = vmul.f32 %v1145, %v1145
      %v1375 = vmul.f32 %v1146, %v1146
      %v1376 = vmul.f32 %v1147, %v1147
      %v1377 = vmul.f32 %v1148, %v1148
      %v1378 = vmul.f32 %v1149, %v1149
      %v1379 = vmul.f32 %v1150, %v1150
      %v1380 = vmul.f32 %v1151, %v1151
      %v1381 = vmul.f32 %v1152, %v1152
      %v1382 = vmul.f32 %v1153, %v1153
      %v1383 = vadd.f32 %v1351, %v1352
      %v1384 = vadd.f32 %v1383, %v1353
      %v1385 = vadd.f32 %v1384, %v1354
      %v1386 = vadd.f32 %v1385, %v1355
      %v1387 = vadd.f32 %v1386, %v1356
      %v1388 = vadd.f32 %v1387, %v1357
      %v1389 = vadd.f32 %v1388, %v1358
      %v1390 = vadd.f32 %v1389, %v1359
      %v1391 = vadd.f32 %v1390, %v1360
      %v1392 = vadd.f32 %v1391, %v1361
      %v1393 = vadd.f32 %v1392, %v1362
      %v1394 = vadd.f32 %v1393, %v1363
      %v1395 = vadd.f32 %v1394, %v1364
      %v1396 = vadd.f32 %v1395, %v1365
      %v1397 = vadd.f32 %v1396, %v1366
      %v1398 = vadd.f32 %v1397, %v1367
      %v1399 = vadd.f32 %v1398, %v1368
      %v1400 = vadd.f32 %v1399, %v1369
      %v1401 = vadd.f32 %v1400, %v1370
      %v1402 = vadd.f32 %v1401, %v1371
      %v1403 = vadd.f32 %v1402, %v1372
      %v1404 = vadd.f32 %v1403, %v1373
      %v1405 = vadd.f32 %v1404, %v1374
      %v1406 = vadd.f32 %v1405, %v1375
      %v1407 = vadd.f32 %v1406, %v1376
      %v1408 = vadd.f32 %v1407, %v1377
      %v1409 = vadd.f32 %v1408, %v1378
      %v1410 = vadd.f32 %v1409, %v1379
      %v1411 = vadd.f32 %v1410, %v1380
      %v1412 = vadd.f32 %v1411, %v1381
      %v1413 = vadd.f32 %v1412, %v1382
      %v1414 = vrot.slane %v1413, 4
      %v1415 = vadd.f32 %v1413, %v1414
      %v1416 = vrot.slane %v1415, 2
      %v1417 = vadd.f32 %v1415, %v1416
      %v1418 = vrot.slane %v1417, 1
      %v1419 = vadd.f32 %v1417, %v1418
      %vm1420 = vcmask 1040384
      %v1421 = vsel %vm1420, %v1350, %v1419
      %1422 = vst [vmem:[%s181] sm:$0x3] %v1421
      %p1423 = scmp.lt.s32.totalorder %s15, 1
      %s1424 = scalar_select %p1423, %s15, 1
      %s1425 = smul.addr %s1424, 32
      %s1426 = smul.addr %s1425, 4
      %s1427 = scalar_lea.vmem %s2, %s1426
      %p1428 = scmp.lt.s32.totalorder %s15, 1
      %s1429 = scalar_select %p1428, %s15, 1
      %s1430 = smul.addr %s1429, 2
      %s1431 = scalar_lea.vmem %s3, %s1430
      // Predicated region
      $region29: #{conv_block_forward.4} parent=27 // pred_check
        %p1432 = pneg %p80
      $region30: #{conv_block_forward.4} parent=27 // pred_check_branch
        %1434 = sbr.rel (%p1432) target = $region32
      $region31: #{conv_block_forward.4} parent=27 // pred_region
        _
      $region32: #{conv_block_forward.4} parent=27 // pred_fallthru
        _
      // Predicated region
      $region33: #{conv_block_forward.4} parent=27 // pred_check
        %p1435 = pneg %p106
      $region34: #{conv_block_forward.4} parent=27 // pred_check_branch
        %1437 = sbr.rel (%p1435) target = $region36
      $region35: #{conv_block_forward.4} parent=27 // pred_region
        _
      $region36: #{conv_block_forward.4} parent=27 // pred_fallthru
        _
    $region28: #{conv_block_forward.4} parent=5 // pred_fallthru
      _
    %p1438 = scmp.le.s32.totalorder 2, %s10
    // Predicated region
    $region37: #{conv_block_forward.4} parent=5 // pred_check
      %p1439 = pneg %p1438
    $region38: #{conv_block_forward.4} parent=5 // pred_check_branch
      %1441 = sbr.rel (%p1439) target = $region40
    $region39: #{conv_block_forward.4} parent=5 // pred_region
      %s1442 = ssub.s32 %s10, 2
      // Predicated region
      $region41: #{conv_block_forward.4} parent=39 // pred_check
        %p1443 = pneg %p86
      $region42: #{conv_block_forward.4} parent=39 // pred_check_branch
        %1445 = sbr.rel (%p1443) target = $region44
      $region43: #{conv_block_forward.4} parent=39 // pred_region
        %p1446 = scmp.lt.s32.totalorder %s16, 1
        %s1447 = scalar_select %p1446, %s16, 1
        %s1448 = smul.addr %s1447, 32
        %s1449 = smul.addr %s1448, 4
        %s1450 = scalar_lea.vmem %s2, %s1449
      $region44: #{conv_block_forward.4} parent=39 // pred_fallthru
        _
      // Predicated region
      $region45: #{conv_block_forward.4} parent=39 // pred_check
        %p1451 = pneg %p112
      $region46: #{conv_block_forward.4} parent=39 // pred_check_branch
        %1453 = sbr.rel (%p1451) target = $region48
      $region47: #{conv_block_forward.4} parent=39 // pred_region
        %p1454 = scmp.lt.s32.totalorder %s16, 1
        %s1455 = scalar_select %p1454, %s16, 1
        %s1456 = smul.addr %s1455, 2
        %s1457 = scalar_lea.vmem %s3, %s1456
      $region48: #{conv_block_forward.4} parent=39 // pred_fallthru
        _
    $region40: #{conv_block_forward.4} parent=5 // pred_fallthru
      _
  $region6: #{conv_block_forward.4} parent=0 // loop_footer
    %s14 = sadd.s32 1, %s10
  $region7: #{conv_block_forward.4} parent=0 // loop_footer_branch
    %9 = sbr.rel target = $region3
  $region8: #{conv_block_forward.4} parent=0 // loop_exit
    _

// kernel: conv_block_forward.7
$region0: #{conv_block_forward.7}
  #allocation0 [shape = 'u32[]', space=smem, size = 0x4, offset = 0x4, fixed_abs, tag = 'smem constant byte address 0x4 - core index']
  #allocation1 [shape = 'u32[144,128]{1,0:T(1,128)}', space=vmem, size = 0x12000, scoped, tag = 'internal scratch']
  %s0 = inlined_call_operand.vmem [shape: bf16[2,8,2,8,256], index: 0, kind: input, shape index: {}]
  %s1 = inlined_call_operand.vmem [shape: f32[2,128], index: 1, kind: input, shape index: {}]
  %s2 = inlined_call_operand.vmem [shape: f32[1,128], index: 2, kind: input, shape index: {}]
  %s3 = inlined_call_operand.vmem [shape: f32[1,128], index: 3, kind: input, shape index: {}]
  %s4 = inlined_call_operand.vmem [shape: f32[2,8,8,128], index: 4, kind: output, shape index: {}]
  %s5 = sld [smem:[#allocation0]]
  $region49: #{conv_block_forward.7} parent=0
    _
  %s7 = ssub.s32 1, %s5
  %s8 = scalar_select 0, %s7, %s5
  loop: start=0, step=1, limit=4
  $region2: #{conv_block_forward.7} parent=0 // loop_pre_header
    _
  $region3: #{conv_block_forward.7} parent=0 // loop_header
    %s10 = sphi 0, %s14
    %p11 = scmp.ge.s32.totalorder %s10, 4
    %s17 = sphi 0, %s29
    %s18 = sphi 0, %s25
    %s19 = sphi 0, %s17
    %s20 = sphi 0, %s18
    %s21 = sphi 0, %s19
    %s22 = sphi 0, %s20
    %s34 = sphi 0, %s36
    %s37 = sphi 0, %s34
    %s38 = sphi 0, %s37
    %s54 = sphi 0, %s38
    %s58 = sphi 0, %s58
    %s60 = sphi 0, %s58
    %s61 = sphi 0, %s60
    %s75 = sphi 0, %s61
    %s79 = sphi 0, %s79
    %s81 = sphi 0, %s79
    %s82 = sphi 0, %s81
    %s96 = sphi 0, %s82
    %s100 = sphi 0, %s100
    %s102 = sphi 0, %s100
    %s103 = sphi 0, %s102
    %s117 = sphi 0, %s103
    %s125 = sphi 0, %s127
    %s128 = sphi 0, %s125
    %s129 = sphi 0, %s128
    %s145 = sphi 0, %s129
  $region4: #{conv_block_forward.7} parent=0 // loop_header_branch
    %13 = sbr.rel (%p11) target = $region8
  $region5: #{conv_block_forward.7} parent=0 // loop_body
    %s15 = ssub.s32 %s10, 1
    %s16 = ssub.s32 %s10, 2
    %s23 = sadd.s32 1, %s18
    %p24 = scmp.ge.s32.totalorder %s23, 1
    %s25 = scalar_select %p24, 0, %s23
    %s26 = sadd.s32 1, %s17
    %s27 = scalar_select %p24, %s26, %s17
    %p28 = scmp.ge.s32.totalorder %s27, 2
    %s29 = scalar_select %p28, 0, %s27
    %s30 = ssub.s32 %s17, %s29
    %s31 = ssub.s32 %s18, %s25
    %s32 = sor.u32 %s30, %s31
    %p33 = scmp.eq.s32.totalorder %s32, 0
    %s35 = sadd.s32 %s34, 1
    %s36 = scalar_select %p33, %s34, %s35
    %p39 = pneg %p33
    %p40 = scmp.eq.s32.totalorder %s10, 1
    %p41 = por %p39, %p40
    %p42 = scmp.ne.s32.totalorder %s34, %s37
    %p43 = scmp.eq.s32.totalorder %s10, 0
    %p44 = por %p42, %p43
    %p45 = scmp.ne.s32.totalorder %s34, %s37
    %p46 = scmp.eq.s32.totalorder %s15, 1
    %p47 = por %p45, %p46
    %p48 = scmp.ne.s32.totalorder %s37, %s38
    %p49 = scmp.eq.s32.totalorder %s15, 0
    %p50 = por %p48, %p49
    %p51 = scmp.ne.s32.totalorder %s37, %s38
    %p52 = scmp.eq.s32.totalorder %s16, 1
    %p53 = por %p51, %p52
    %p55 = scmp.ne.s32.totalorder %s38, %s54
    %p56 = scmp.eq.s32.totalorder %s16, 0
    %p57 = por %p55, %p56
    %s59 = sadd.s32 %s58, 1
    %p62 = scmp.eq.s32.totalorder %s10, 1
    %p63 = scmp.ne.s32.totalorder %s58, %s60
    %p64 = scmp.eq.s32.totalorder %s10, 0
    %p65 = por %p63, %p64
    %p66 = scmp.ne.s32.totalorder %s58, %s60
    %p67 = scmp.eq.s32.totalorder %s15, 1
    %p68 = por %p66, %p67
    %p69 = scmp.ne.s32.totalorder %s60, %s61
    %p70 = scmp.eq.s32.totalorder %s15, 0
    %p71 = por %p69, %p70
    %p72 = scmp.ne.s32.totalorder %s60, %s61
    %p73 = scmp.eq.s32.totalorder %s16, 1
    %p74 = por %p72, %p73
    %p76 = scmp.ne.s32.totalorder %s61, %s75
    %p77 = scmp.eq.s32.totalorder %s16, 0
    %p78 = por %p76, %p77
    %s80 = sadd.s32 %s79, 1
    %p83 = scmp.eq.s32.totalorder %s10, 1
    %p84 = scmp.ne.s32.totalorder %s79, %s81
    %p85 = scmp.eq.s32.totalorder %s10, 0
    %p86 = por %p84, %p85
    %p87 = scmp.ne.s32.totalorder %s79, %s81
    %p88 = scmp.eq.s32.totalorder %s15, 1
    %p89 = por %p87, %p88
    %p90 = scmp.ne.s32.totalorder %s81, %s82
    %p91 = scmp.eq.s32.totalorder %s15, 0
    %p92 = por %p90, %p91
    %p93 = scmp.ne.s32.totalorder %s81, %s82
    %p94 = scmp.eq.s32.totalorder %s16, 1
    %p95 = por %p93, %p94
    %p97 = scmp.ne.s32.totalorder %s82, %s96
    %p98 = scmp.eq.s32.totalorder %s16, 0
    %p99 = por %p97, %p98
    %s101 = sadd.s32 %s100, 1
    %p104 = scmp.eq.s32.totalorder %s10, 1
    %p105 = scmp.ne.s32.totalorder %s100, %s102
    %p106 = scmp.eq.s32.totalorder %s10, 0
    %p107 = por %p105, %p106
    %p108 = scmp.ne.s32.totalorder %s100, %s102
    %p109 = scmp.eq.s32.totalorder %s15, 1
    %p110 = por %p108, %p109
    %p111 = scmp.ne.s32.totalorder %s102, %s103
    %p112 = scmp.eq.s32.totalorder %s15, 0
    %p113 = por %p111, %p112
    %p114 = scmp.ne.s32.totalorder %s102, %s103
    %p115 = scmp.eq.s32.totalorder %s16, 1
    %p116 = por %p114, %p115
    %p118 = scmp.ne.s32.totalorder %s103, %s117
    %p119 = scmp.eq.s32.totalorder %s16, 0
    %p120 = por %p118, %p119
    %s121 = ssub.s32 %s17, %s29
    %s122 = ssub.s32 %s18, %s25
    %s123 = sor.u32 %s121, %s122
    %p124 = scmp.eq.s32.totalorder %s123, 0
    %s126 = sadd.s32 %s125, 1
    %s127 = scalar_select %p124, %s125, %s126
    %p130 = pneg %p124
    %p131 = scmp.eq.s32.totalorder %s10, 1
    %p132 = por %p130, %p131
    %p133 = scmp.ne.s32.totalorder %s125, %s128
    %p134 = scmp.eq.s32.totalorder %s10, 0
    %p135 = por %p133, %p134
    %p136 = scmp.ne.s32.totalorder %s125, %s128
    %p137 = scmp.eq.s32.totalorder %s15, 1
    %p138 = por %p136, %p137
    %p139 = scmp.ne.s32.totalorder %s128, %s129
    %p140 = scmp.eq.s32.totalorder %s15, 0
    %p141 = por %p139, %p140
    %p142 = scmp.ne.s32.totalorder %s128, %s129
    %p143 = scmp.eq.s32.totalorder %s16, 1
    %p144 = por %p142, %p143
    %p146 = scmp.ne.s32.totalorder %s129, %s145
    %p147 = scmp.eq.s32.totalorder %s16, 0
    %p148 = por %p146, %p147
    %p149 = scmp.le.s32.totalorder 1, %s10
    %p150 = scmp.lt.s32.totalorder %s10, 3
    %p151 = pnand %p149, %p150
    %p152 = pneg %p151
    // Predicated region
    $region9: #{conv_block_forward.7} parent=5 // pred_check
      _
    $region10: #{conv_block_forward.7} parent=5 // pred_check_branch
      %154 = sbr.rel (%p151) target = $region12
    $region11: #{conv_block_forward.7} parent=5 // pred_region
      %s155 = ssub.s32 %s10, 1
      // Predicated region
      $region13: #{conv_block_forward.7} parent=11 // pred_check
        %p156 = pneg %p71
      $region14: #{conv_block_forward.7} parent=11 // pred_check_branch
        %158 = sbr.rel (%p156) target = $region16
      $region15: #{conv_block_forward.7} parent=11 // pred_region
        _
      $region16: #{conv_block_forward.7} parent=11 // pred_fallthru
        _
      // Predicated region
      $region17: #{conv_block_forward.7} parent=11 // pred_check
        %p159 = pneg %p92
      $region18: #{conv_block_forward.7} parent=11 // pred_check_branch
        %161 = sbr.rel (%p159) target = $region20
      $region19: #{conv_block_forward.7} parent=11 // pred_region
        _
      $region20: #{conv_block_forward.7} parent=11 // pred_fallthru
        _
      // Predicated region
      $region21: #{conv_block_forward.7} parent=11 // pred_check
        %p162 = pneg %p113
      $region22: #{conv_block_forward.7} parent=11 // pred_check_branch
        %164 = sbr.rel (%p162) target = $region24
      $region23: #{conv_block_forward.7} parent=11 // pred_region
        _
      $region24: #{conv_block_forward.7} parent=11 // pred_fallthru
        _
    $region12: #{conv_block_forward.7} parent=5 // pred_fallthru
      _
    %p165 = scmp.lt.s32.totalorder %s10, 2
    // Predicated region
    $region25: #{conv_block_forward.7} parent=5 // pred_check
      %p166 = pneg %p165
    $region26: #{conv_block_forward.7} parent=5 // pred_check_branch
      %168 = sbr.rel (%p166) target = $region28
    $region27: #{conv_block_forward.7} parent=5 // pred_region
      // Predicated region
      $region29: #{conv_block_forward.7} parent=27 // pred_check
        %p169 = pneg %p44
      $region30: #{conv_block_forward.7} parent=27 // pred_check_branch
        %171 = sbr.rel (%p169) target = $region32
      $region31: #{conv_block_forward.7} parent=27 // pred_region
        %s172 = smul.u32 8, %s18
        %p173 = scmp.lt.s32.totalorder %s17, 1
        %s174 = scalar_select %p173, %s17, 1
        %p175 = scmp.lt.s32.totalorder %s172, 7
        %s176 = scalar_select %p175, %s172, 7
        %s177 = smul.addr %s176, 4
        %s178 = smul.addr %s174, 32
        %s179 = sadd.s32 %s177, %s178
        %s180 = smul.addr %s179, 4
        %s181 = scalar_lea.vmem %s0, %s180
        %s182 = smul.u32 8, %s18
      $region32: #{conv_block_forward.7} parent=27 // pred_fallthru
        _
    $region28: #{conv_block_forward.7} parent=5 // pred_fallthru
      _
    %p183 = scmp.le.s32.totalorder 1, %s10
    %p184 = scmp.lt.s32.totalorder %s10, 3
    %p185 = pnand %p183, %p184
    %p186 = pneg %p185
    // Predicated region
    $region33: #{conv_block_forward.7} parent=5 // pred_check
      _
    $region34: #{conv_block_forward.7} parent=5 // pred_check_branch
      %188 = sbr.rel (%p185) target = $region36
    $region35: #{conv_block_forward.7} parent=5 // pred_region
      %s189 = ssub.s32 %s10, 1
      %s190 = smul.u32 8, %s20
      %p191 = scmp.lt.s32.totalorder %s19, 1
      %s192 = scalar_select %p191, %s19, 1
      %p193 = scmp.lt.s32.totalorder %s190, 7
      %s194 = scalar_select %p193, %s190, 7
      %s195 = smul.addr %s194, 4
      %s196 = smul.addr %s192, 32
      %s197 = sadd.s32 %s195, %s196
      %s198 = smul.addr %s197, 4
      %s199 = scalar_lea.vmem %s0, %s198
      %p200 = pneg %p50
      %p201 = pneg %p47
      %p202 = pneg %p71
      %p203 = pneg %p68
      %p204 = pneg %p92
      %p205 = pneg %p89
      %p206 = pneg %p113
      %p207 = pneg %p110
      %p208 = pneg %p141
      %p209 = pneg %p138
      %s210 = smul.u32 8, %s20
      %p211 = scmp.lt.s32.totalorder %s19, 1
      %s212 = scalar_select %p211, %s19, 1
      %p213 = scmp.lt.s32.totalorder %s210, 7
      %s214 = scalar_select %p213, %s210, 7
      %s215 = smul.addr %s212, 8
      %s216 = sadd.s32 %s214, %s215
      %s217 = smul.addr %s216, 8
      %s218 = scalar_lea.vmem %s4, %s217
      %s219 = smul.u32 8, %s20
      %p220 = scmp.lt.s32.totalorder %s19, 1
      %s221 = scalar_select %p220, %s19, 1
      %p222 = scmp.lt.s32.totalorder %s219, 7
      %s223 = scalar_select %p222, %s219, 7
      %s224 = smul.addr %s223, 4
      %s225 = smul.addr %s221, 32
      %s226 = sadd.s32 %s224, %s225
      %s227 = smul.addr %s226, 4
      %s228 = scalar_lea.vmem %s0, %s227
      %s229 = smul.u32 8, %s20
      %s230 = smul.u32 8, %s20
      %p231 = scmp.lt.s32.totalorder %s19, 1
      %s232 = scalar_select %p231, %s19, 1
      %p233 = scmp.lt.s32.totalorder %s230, 7
      %s234 = scalar_select %p233, %s230, 7
      %s235 = smul.addr %s232, 8
      %s236 = sadd.s32 %s234, %s235
      %s237 = smul.addr %s236, 8
      %s238 = scalar_lea.vmem %s4, %s237
      %s239 = smul.u32 8, %s20
      %v240 = vld [vmem:[%s1] sm:$0x1]
      %v241 = vmul.f32 %v240, 0.001953125
      %v242 = vld [vmem:[%s1 + $0x1] sm:$0x1]
      %v243 = vmul.f32 %v242, 0.001953125
      %v244 = vmul.f32 %v241, %v241
      %v245 = vsub.f32 %v243, %v244
      %v246 = vmax.f32 %v245, 0.0
      %v247 = vadd.f32 %v246, 1e-05
      %v248 = vrsqrt.pop %v247
      %v249 = vld [vmem:[%s2] sm:$0x1]
      %v250 = vmul.f32 %v249, %v248
      %v251 = vld [vmem:[%s3] sm:$0x1]
      %v252 = vmul.f32 %v241, %v250
      %v253 = vsub.f32 %v251, %v252
      %v254 = vld [vmem:[%s228] sm:$0xff]
      %v255 = vld [vmem:[%s228 + $0x8] sm:$0xff]
      %v256 = vld [vmem:[%s228 + $0x10] sm:$0xff]
      %v257 = vld [vmem:[%s228 + $0x18] sm:$0xff]
      %v258 = vld [vmem:[%s228 + $0x20] sm:$0xff]
      %v259 = vld [vmem:[%s228 + $0x28] sm:$0xff]
      %v260 = vld [vmem:[%s228 + $0x30] sm:$0xff]
      %v261 = vld [vmem:[%s228 + $0x38] sm:$0xff]
      %v262 = vld [vmem:[%s228 + $0x40] sm:$0xff]
      %v263 = vld [vmem:[%s228 + $0x48] sm:$0xff]
      %v264 = vld [vmem:[%s228 + $0x50] sm:$0xff]
      %v265 = vld [vmem:[%s228 + $0x58] sm:$0xff]
      %v266 = vld [vmem:[%s228 + $0x60] sm:$0xff]
      %v267 = vld [vmem:[%s228 + $0x68] sm:$0xff]
      %v268 = vld [vmem:[%s228 + $0x70] sm:$0xff]
      %v269 = vld [vmem:[%s228 + $0x78] sm:$0xff]
      %v270 = vunpack.c.l.bf16 %v254
      %v271 = vunpack.c.h.bf16 %v254
      %v272 = vunpack.c.l.bf16 %v255
      %v273 = vunpack.c.h.bf16 %v255
      %v274 = vunpack.c.l.bf16 %v256
      %v275 = vunpack.c.h.bf16 %v256
      %v276 = vunpack.c.l.bf16 %v257
      %v277 = vunpack.c.h.bf16 %v257
      %v278 = vunpack.c.l.bf16 %v258
      %v279 = vunpack.c.h.bf16 %v258
      %v280 = vunpack.c.l.bf16 %v259
      %v281 = vunpack.c.h.bf16 %v259
      %v282 = vunpack.c.l.bf16 %v260
      %v283 = vunpack.c.h.bf16 %v260
      %v284 = vunpack.c.l.bf16 %v261
      %v285 = vunpack.c.h.bf16 %v261
      %v286 = vunpack.c.l.bf16 %v262
      %v287 = vunpack.c.h.bf16 %v262
      %v288 = vunpack.c.l.bf16 %v263
      %v289 = vunpack.c.h.bf16 %v263
      %v290 = vunpack.c.l.bf16 %v264
      %v291 = vunpack.c.h.bf16 %v264
      %v292 = vunpack.c.l.bf16 %v265
      %v293 = vunpack.c.h.bf16 %v265
      %v294 = vunpack.c.l.bf16 %v266
      %v295 = vunpack.c.h.bf16 %v266
      %v296 = vunpack.c.l.bf16 %v267
      %v297 = vunpack.c.h.bf16 %v267
      %v298 = vunpack.c.l.bf16 %v268
      %v299 = vunpack.c.h.bf16 %v268
      %v300 = vunpack.c.l.bf16 %v269
      %v301 = vunpack.c.h.bf16 %v269
      %v302 = vlaneseq
      %v303 = vshrl.u32 %v302, 7
      %v304 = vsub.s32 0, %v303
      %v305 = vrot.slane %v250, %v304
      %v306 = vmul.f32 %v270, %v305
      %v307 = vmul.f32 %v271, %v305
      %v308 = vmul.f32 %v272, %v305
      %v309 = vmul.f32 %v273, %v305
      %v310 = vmul.f32 %v274, %v305
      %v311 = vmul.f32 %v275, %v305
      %v312 = vmul.f32 %v276, %v305
      %v313 = vmul.f32 %v277, %v305
      %v314 = vmul.f32 %v278, %v305
      %v315 = vmul.f32 %v279, %v305
      %v316 = vmul.f32 %v280, %v305
      %v317 = vmul.f32 %v281, %v305
      %v318 = vmul.f32 %v282, %v305
      %v319 = vmul.f32 %v283, %v305
      %v320 = vmul.f32 %v284, %v305
      %v321 = vmul.f32 %v285, %v305
      %v322 = vmul.f32 %v286, %v305
      %v323 = vmul.f32 %v287, %v305
      %v324 = vmul.f32 %v288, %v305
      %v325 = vmul.f32 %v289, %v305
      %v326 = vmul.f32 %v290, %v305
      %v327 = vmul.f32 %v291, %v305
      %v328 = vmul.f32 %v292, %v305
      %v329 = vmul.f32 %v293, %v305
      %v330 = vmul.f32 %v294, %v305
      %v331 = vmul.f32 %v295, %v305
      %v332 = vmul.f32 %v296, %v305
      %v333 = vmul.f32 %v297, %v305
      %v334 = vmul.f32 %v298, %v305
      %v335 = vmul.f32 %v299, %v305
      %v336 = vmul.f32 %v300, %v305
      %v337 = vmul.f32 %v301, %v305
      %v338 = vlaneseq
      %v339 = vshrl.u32 %v338, 7
      %v340 = vsub.s32 0, %v339
      %v341 = vrot.slane %v253, %v340
      %v342 = vadd.f32 %v306, %v341
      %v343 = vadd.f32 %v307, %v341
      %v344 = vadd.f32 %v308, %v341
      %v345 = vadd.f32 %v309, %v341
      %v346 = vadd.f32 %v310, %v341
      %v347 = vadd.f32 %v311, %v341
      %v348 = vadd.f32 %v312, %v341
      %v349 = vadd.f32 %v313, %v341
      %v350 = vadd.f32 %v314, %v341
      %v351 = vadd.f32 %v315, %v341
      %v352 = vadd.f32 %v316, %v341
      %v353 = vadd.f32 %v317, %v341
      %v354 = vadd.f32 %v318, %v341
      %v355 = vadd.f32 %v319, %v341
      %v356 = vadd.f32 %v320, %v341
      %v357 = vadd.f32 %v321, %v341
      %v358 = vadd.f32 %v322, %v341
      %v359 = vadd.f32 %v323, %v341
      %v360 = vadd.f32 %v324, %v341
      %v361 = vadd.f32 %v325, %v341
      %v362 = vadd.f32 %v326, %v341
      %v363 = vadd.f32 %v327, %v341
      %v364 = vadd.f32 %v328, %v341
      %v365 = vadd.f32 %v329, %v341
      %v366 = vadd.f32 %v330, %v341
      %v367 = vadd.f32 %v331, %v341
      %v368 = vadd.f32 %v332, %v341
      %v369 = vadd.f32 %v333, %v341
      %v370 = vadd.f32 %v334, %v341
      %v371 = vadd.f32 %v335, %v341
      %v372 = vadd.f32 %v336, %v341
      %v373 = vadd.f32 %v337, %v341
      %v374 = vmax.f32 %v342, 0.0
      %v375 = vmax.f32 %v343, 0.0
      %v376 = vmax.f32 %v344, 0.0
      %v377 = vmax.f32 %v345, 0.0
      %v378 = vmax.f32 %v346, 0.0
      %v379 = vmax.f32 %v347, 0.0
      %v380 = vmax.f32 %v348, 0.0
      %v381 = vmax.f32 %v349, 0.0
      %v382 = vmax.f32 %v350, 0.0
      %v383 = vmax.f32 %v351, 0.0
      %v384 = vmax.f32 %v352, 0.0
      %v385 = vmax.f32 %v353, 0.0
      %v386 = vmax.f32 %v354, 0.0
      %v387 = vmax.f32 %v355, 0.0
      %v388 = vmax.f32 %v356, 0.0
      %v389 = vmax.f32 %v357, 0.0
      %v390 = vmax.f32 %v358, 0.0
      %v391 = vmax.f32 %v359, 0.0
      %v392 = vmax.f32 %v360, 0.0
      %v393 = vmax.f32 %v361, 0.0
      %v394 = vmax.f32 %v362, 0.0
      %v395 = vmax.f32 %v363, 0.0
      %v396 = vmax.f32 %v364, 0.0
      %v397 = vmax.f32 %v365, 0.0
      %v398 = vmax.f32 %v366, 0.0
      %v399 = vmax.f32 %v367, 0.0
      %v400 = vmax.f32 %v368, 0.0
      %v401 = vmax.f32 %v369, 0.0
      %v402 = vmax.f32 %v370, 0.0
      %v403 = vmax.f32 %v371, 0.0
      %v404 = vmax.f32 %v372, 0.0
      %v405 = vmax.f32 %v373, 0.0
      %v406 = vadd.f32 %v374, %v375
      %v407 = vadd.f32 %v378, %v379
      %v408 = vadd.f32 %v382, %v383
      %v409 = vadd.f32 %v386, %v387
      %v410 = vadd.f32 %v390, %v391
      %v411 = vadd.f32 %v394, %v395
      %v412 = vadd.f32 %v398, %v399
      %v413 = vadd.f32 %v402, %v403
      %v414 = vadd.f32 %v406, %v376
      %v415 = vadd.f32 %v407, %v380
      %v416 = vadd.f32 %v408, %v384
      %v417 = vadd.f32 %v409, %v388
      %v418 = vadd.f32 %v410, %v392
      %v419 = vadd.f32 %v411, %v396
      %v420 = vadd.f32 %v412, %v400
      %v421 = vadd.f32 %v413, %v404
      %v422 = vadd.f32 %v414, %v377
      %v423 = vadd.f32 %v415, %v381
      %v424 = vadd.f32 %v416, %v385
      %v425 = vadd.f32 %v417, %v389
      %v426 = vadd.f32 %v418, %v393
      %v427 = vadd.f32 %v419, %v397
      %v428 = vadd.f32 %v420, %v401
      %v429 = vadd.f32 %v421, %v405
      %v430 = vmul.f32 %v422, 0.25
      %v431 = vmul.f32 %v423, 0.25
      %v432 = vmul.f32 %v424, 0.25
      %v433 = vmul.f32 %v425, 0.25
      %v434 = vmul.f32 %v426, 0.25
      %v435 = vmul.f32 %v427, 0.25
      %v436 = vmul.f32 %v428, 0.25
      %v437 = vmul.f32 %v429, 0.25
      %438 = vst [vmem:[%s238] sm:$0xff] %v430
      %439 = vst [vmem:[%s238 + $0x8] sm:$0xff] %v431
      %440 = vst [vmem:[%s238 + $0x10] sm:$0xff] %v432
      %441 = vst [vmem:[%s238 + $0x18] sm:$0xff] %v433
      %442 = vst [vmem:[%s238 + $0x20] sm:$0xff] %v434
      %443 = vst [vmem:[%s238 + $0x28] sm:$0xff] %v435
      %444 = vst [vmem:[%s238 + $0x30] sm:$0xff] %v436
      %445 = vst [vmem:[%s238 + $0x38] sm:$0xff] %v437
      %s446 = smul.u32 8, %s20
      %p447 = scmp.lt.s32.totalorder %s19, 1
      %s448 = scalar_select %p447, %s19, 1
      %p449 = scmp.lt.s32.totalorder %s446, 7
      %s450 = scalar_select %p449, %s446, 7
      %s451 = smul.addr %s448, 8
      %s452 = sadd.s32 %s450, %s451
      %s453 = smul.addr %s452, 8
      %s454 = scalar_lea.vmem %s4, %s453
      // Predicated region
      $region37: #{conv_block_forward.7} parent=35 // pred_check
        %p455 = pneg %p138
      $region38: #{conv_block_forward.7} parent=35 // pred_check_branch
        %457 = sbr.rel (%p455) target = $region40
      $region39: #{conv_block_forward.7} parent=35 // pred_region
        %s458 = smul.u32 8, %s20
      $region40: #{conv_block_forward.7} parent=35 // pred_fallthru
        _
    $region36: #{conv_block_forward.7} parent=5 // pred_fallthru
      _
    %p459 = scmp.le.s32.totalorder 2, %s10
    // Predicated region
    $region41: #{conv_block_forward.7} parent=5 // pred_check
      %p460 = pneg %p459
    $region42: #{conv_block_forward.7} parent=5 // pred_check_branch
      %462 = sbr.rel (%p460) target = $region44
    $region43: #{conv_block_forward.7} parent=5 // pred_region
      %s463 = ssub.s32 %s10, 2
      // Predicated region
      $region45: #{conv_block_forward.7} parent=43 // pred_check
        %p464 = pneg %p144
      $region46: #{conv_block_forward.7} parent=43 // pred_check_branch
        %466 = sbr.rel (%p464) target = $region48
      $region47: #{conv_block_forward.7} parent=43 // pred_region
        %s467 = smul.u32 8, %s22
        %p468 = scmp.lt.s32.totalorder %s21, 1
        %s469 = scalar_select %p468, %s21, 1
        %p470 = scmp.lt.s32.totalorder %s467, 7
        %s471 = scalar_select %p470, %s467, 7
        %s472 = smul.addr %s469, 8
        %s473 = sadd.s32 %s471, %s472
        %s474 = smul.addr %s473, 8
        %s475 = scalar_lea.vmem %s4, %s474
      $region48: #{conv_block_forward.7} parent=43 // pred_fallthru
        _
    $region44: #{conv_block_forward.7} parent=5 // pred_fallthru
      _
  $region6: #{conv_block_forward.7} parent=0 // loop_footer
    %s14 = sadd.s32 1, %s10
  $region7: #{conv_block_forward.7} parent=0 // loop_footer_branch
    %9 = sbr.rel target = $region3
  $region8: #{conv_block_forward.7} parent=0 // loop_exit
    _

</llo_original>
